<compile_context>
chip_gen: v7x
topology: tpu7x:2x2x1
jax: 0.10.0
libtpu: 0.0.40
codegen_flags: <defaults>
</compile_context>

<pallas_src>
import functools

import numpy as np
import jax
import jax.numpy as jnp
from jax.experimental import pallas as pl
from jax.experimental.pallas import tpu as pltpu


def _tree_lstm_kernel(level_offsets, level_counts, hp,
                      x_ref, A_ref, h0_ref, c0_ref,
                      wiou_ref, uiou_ref, biou_ref,
                      ufw_ref, ufb_ref, linw_ref, linb_ref,
                      out_ref,
                      hc_s, c_s, iou_s):
    """Level-synchronous child-sum Tree-LSTM sweep over level-sorted nodes.

    All per-level accesses are contiguous static slices (no masks / broadcasts).
    hc_s is the persistent [h | f*c] scratch in the MXU dtype; c_s / iou_s are f32.
    """
    f32 = jnp.float32
    HP = hp
    mxu_dt = hc_s.dtype
    Np = c_s.shape[0]

    def dot(a, b):
        return jnp.dot(a, b, preferred_element_type=f32)   # f32 MXU accumulation

    # ---- init -----------------------------------------------------------------
    # iou = W_iou(dropout(x))  (dropout == identity in eval mode), one fused matmul
    iou_s[...] = dot(x_ref[...], wiou_ref[...])
    c_s[...] = c0_ref[...]
    hc_s[:, pl.ds(0, HP)] = h0_ref[...]                      # h mirror
    hc_s[:, pl.ds(HP, HP)] = jnp.zeros((Np, HP), mxu_dt)     # f*c staging half

    def apply_nodes(off, cnt):
        # apply_node_func restricted to the contiguous row block of one level
        rows = pl.ds(off, cnt)
        iou = iou_s[rows, :] + biou_ref[...]
        i_g = jax.nn.sigmoid(iou[:, 0:HP])           # 128-lane aligned gate slices
        o_g = jax.nn.sigmoid(iou[:, HP:2 * HP])
        u_g = jnp.tanh(iou[:, 2 * HP:3 * HP])
        c_new = i_g * u_g + c_s[rows, :]
        c_s[rows, :] = c_new
        hc_s[rows, pl.ds(0, HP)] = (o_g * jnp.tanh(c_new)).astype(mxu_dt)

    # level 0 (leaves): apply_node_func only
    apply_nodes(level_offsets[0], level_counts[0])

    # levels 1..L-1: reduce over children (all of which live in rows [0, off)), then apply
    for l in range(1, len(level_counts)):
        off, cnt = level_offsets[l], level_counts[l]
        rows = pl.ds(off, cnt)
        kids = pl.ds(0, off)

        # per-child forget gate f = sigmoid(U_f h_child + b_f), only candidate child rows
        f = jax.nn.sigmoid(dot(hc_s[kids, pl.ds(0, HP)], ufw_ref[...]) + ufb_ref[...])
        hc_s[kids, pl.ds(HP, HP)] = (f * c_s[kids, :]).astype(mxu_dt)

        # fused adjacency reduction, restricted to this level's cnt rows:
        #   [h_tild | c_red] = A[level rows, :] @ [h | f*c]
        red = dot(A_ref[rows, :], hc_s[...])
        h_tild = red[:, 0:HP]
        c_red = red[:, HP:2 * HP]

        # reduce OVERWRITES iou with U_iou(h_tild) and c with c_red (as in the module)
        iou_s[rows, :] = dot(h_tild.astype(mxu_dt), uiou_ref[...])
        c_s[rows, :] = c_red
        apply_nodes(off, cnt)

    # final: logits = Linear(dropout(h)), lane-dense 128-padded output
    out_ref[...] = (dot(hc_s[:, pl.ds(0, HP)], linw_ref[...])
                    + linb_ref[...]).astype(out_ref.dtype)


def _vmem_bytes(shape, dtype):
    r, c = shape
    return (-(-r // 8) * 8) * (-(-c // 128) * 128) * jnp.dtype(dtype).itemsize


def tree_lstm_forward(x, A, node_level, h0, c0,
                      w_iou, u_iou, b_iou, u_f_w, u_f_b, lin_w, lin_b,
                      *, mxu_dtype=jnp.bfloat16):
    """Host wrapper: level-sorts/pads node data, pads weights gate-per-128-lane,
    runs the kernel, and un-permutes the logits back to the original node order."""
    f32 = jnp.float32
    x = np.asarray(x, np.float32)
    A = np.asarray(A, np.float32)
    h0 = np.asarray(h0, np.float32)
    c0 = np.asarray(c0, np.float32)
    lvl = np.asarray(node_level, np.int64)

    N, X = x.shape
    H = h0.shape[1]
    DIM = np.asarray(lin_w).shape[1]
    L = int(lvl.max()) + 1

    HP = -(-H // 128) * 128
    XP = -(-X // 128) * 128
    DIMP = -(-DIM // 128) * 128
    sub = 16 if jnp.dtype(mxu_dtype).itemsize < 4 else 8   # sublane tile of MXU dtype

    # --- level-sort nodes; pad each level group to a sublane multiple -------------
    offsets, counts = [], []
    pos_of = np.zeros(N, np.int64)
    src_of = []                     # original node id at each padded position (-1 = pad)
    for l in range(L):
        nodes_l = np.nonzero(lvl == l)[0]
        cnt = int(nodes_l.size)
        cnt_p = -(-max(cnt, 1) // sub) * sub
        offsets.append(len(src_of))
        counts.append(cnt_p)
        for i, v in enumerate(nodes_l):
            pos_of[v] = len(src_of) + i
        src_of.extend(list(nodes_l) + [-1] * (cnt_p - cnt))
    Np = len(src_of)
    src_of = np.asarray(src_of, np.int64)
    ridx = np.nonzero(src_of >= 0)[0]

    def scatter_rows(a, lane_pad):
        out = np.zeros((Np, a.shape[1] + lane_pad), np.float32)
        out[ridx, :a.shape[1]] = a[src_of[ridx]]
        return out

    x_p = scatter_rows(x, XP - X)
    h0_p = scatter_rows(h0, HP - H)
    c0_p = scatter_rows(c0, HP - H)

    A_p = np.zeros((Np, Np), np.float32)          # child->parent adjacency, level-sorted
    A_p[np.ix_(ridx, ridx)] = A[np.ix_(src_of[ridx], src_of[ridx])]

    # --- weights: pre-transposed [in, out]; gate blocks padded to 128 lanes each ---
    def pad_gates(w, in_pad):                     # [in, 3H] -> [in+in_pad, 3*HP]
        w = np.asarray(w, np.float32)
        cols = [np.pad(w[:, g * H:(g + 1) * H], ((0, in_pad), (0, HP - H)))
                for g in range(3)]
        return np.concatenate(cols, axis=1)

    wiou_p = pad_gates(w_iou, XP - X)
    uiou_p = pad_gates(u_iou, HP - H)
    biou_p = pad_gates(b_iou, 0)
    ufw_p = np.pad(np.asarray(u_f_w, np.float32), ((0, HP - H), (0, HP - H)))
    ufb_p = np.pad(np.asarray(u_f_b, np.float32), ((0, 0), (0, HP - H)))
    linw_p = np.pad(np.asarray(lin_w, np.float32), ((0, HP - H), (0, DIMP - DIM)))
    linb_p = np.pad(np.asarray(lin_b, np.float32), ((0, 0), (0, DIMP - DIM)))

    mxu = lambda a: jnp.asarray(a, mxu_dtype)
    inputs = (mxu(x_p), mxu(A_p), mxu(h0_p), jnp.asarray(c0_p, f32),
              mxu(wiou_p), mxu(uiou_p), jnp.asarray(biou_p, f32),
              mxu(ufw_p), jnp.asarray(ufb_p, f32),
              mxu(linw_p), jnp.asarray(linb_p, f32))

    scratch = [pltpu.VMEM((Np, 2 * HP), mxu_dtype),   # [h | f*c]
               pltpu.VMEM((Np, HP), f32),             # c
               pltpu.VMEM((Np, 3 * HP), f32)]         # iou (gate-per-128-lane)

    # --- VMEM budget: whole-array resident, generation-aware cap -------------------
    resident = sum(_vmem_bytes(a.shape, a.dtype) for a in inputs)
    resident += _vmem_bytes((Np, DIMP), f32)
    resident += (_vmem_bytes((Np, 2 * HP), mxu_dtype)
                 + _vmem_bytes((Np, HP), f32) + _vmem_bytes((Np, 3 * HP), f32))
    cap = 64 * 1024 * 1024
    try:
        cap = int(pltpu.get_tpu_info().vmem_capacity_bytes)
    except Exception:
        pass
    vmem_budget = min(int(0.85 * cap), max(int(1.3 * resident), 16 * 1024 * 1024))

    # --- cost estimate (helps XLA schedule host-side pads / final gather) ----------
    flops = 2 * Np * XP * 3 * HP + 2 * Np * HP * DIMP
    trans = Np * 3 * HP + Np * HP
    for l in range(1, L):
        off, cnt = offsets[l], counts[l]
        flops += 2 * (off * HP * HP + cnt * Np * 2 * HP + cnt * HP * 3 * HP)
        trans += off * HP
    cost = pl.CostEstimate(flops=int(flops), transcendentals=int(trans),
                           bytes_accessed=int(resident))

    vmem_spec = lambda: pl.BlockSpec(memory_space=pltpu.MemorySpace.VMEM)
    out_p = pl.pallas_call(
        functools.partial(_tree_lstm_kernel, tuple(offsets), tuple(counts), HP),
        out_shape=jax.ShapeDtypeStruct((Np, DIMP), f32),
        in_specs=[vmem_spec() for _ in inputs],
        out_specs=vmem_spec(),
        scratch_shapes=scratch,
        compiler_params=pltpu.CompilerParams(vmem_limit_bytes=vmem_budget),
        cost_estimate=cost,
    )(*inputs)

    # un-permute to original node order, drop lane padding
    return out_p[jnp.asarray(pos_of, dtype=jnp.int32), :DIM]


def ref_forward_numpy(x, children, level, h0, c0,
                      w_iou, u_iou, b_iou, ufw, ufb, linw, linb):
    """Pure-numpy per-node topological reference (mirrors DGL prop_nodes_topo)."""
    sig = lambda z: 1.0 / (1.0 + np.exp(-z))
    n, h_size = h0.shape
    iou = x @ w_iou
    h = np.array(h0, dtype=np.float64)
    c = np.array(c0, dtype=np.float64)
    order = sorted(range(n), key=lambda v: level[v])
    for v in order:
        kids = children[v]
        if kids:
            hk = h[kids]
            ck = c[kids]
            h_tild = hk.sum(0)
            f = sig(hk @ ufw + ufb[0])
            c[v] = (f * ck).sum(0)
            iou[v] = h_tild @ u_iou
        z = iou[v] + b_iou[0]
        i_g = sig(z[:h_size])
        o_g = sig(z[h_size:2 * h_size])
        u_g = np.tanh(z[2 * h_size:3 * h_size])
        c[v] = i_g * u_g + c[v]
        h[v] = o_g * np.tanh(c[v])
    return h @ linw + linb


if __name__ == "__main__":
    X_SIZE, H_SIZE, DIM = 16, 32, 8

    # A small tree: parents[i] = parent of node i (root = -1). Edges go child -> parent.
    parents = [-1, 0, 0, 0, 1, 1, 2, 2, 2, 3, 4, 4, 6, 6, 9, 9]
    N = len(parents)
    children = [[] for _ in range(N)]
    for ch, p in enumerate(parents):
        if p >= 0:
            children[p].append(ch)

    # Topological level per node (0 = leaves, increasing toward the root).
    level = [0] * N
    changed = True
    while changed:
        changed = False
        for v in range(N):
            if children[v]:
                lv = 1 + max(level[k] for k in children[v])
                if lv != level[v]:
                    level[v] = lv
                    changed = True

    # Dense child->parent adjacency (0/1 — exact in bf16).
    A_np = np.zeros((N, N), np.float32)
    for p in range(N):
        for ch in children[p]:
            A_np[p, ch] = 1.0
    level_np = np.asarray(level, np.int32)

    # Deterministic parameter / input init (pre-transposed [in, out] weight layout).
    key = jax.random.PRNGKey(0)
    ks = jax.random.split(key, 10)
    rn = lambda k, shape, s=0.2: jax.random.normal(k, shape, jnp.float32) * s

    x = rn(ks[0], (N, X_SIZE), 1.0)
    h0 = rn(ks[1], (N, H_SIZE), 0.1)
    c0 = rn(ks[2], (N, H_SIZE), 0.1)

    w_iou = rn(ks[3], (X_SIZE, 3 * H_SIZE))      # W_iou (x -> 3h, no bias)
    u_iou = rn(ks[4], (H_SIZE, 3 * H_SIZE))      # U_iou (h -> 3h, no bias)
    b_iou = rn(ks[5], (1, 3 * H_SIZE), 0.05)     # b_iou (zeros in torch; random for test)
    u_f_w = rn(ks[6], (H_SIZE, H_SIZE))          # U_f weight
    u_f_b = rn(ks[7], (1, H_SIZE), 0.05)         # U_f bias
    lin_w = rn(ks[8], (H_SIZE, DIM))             # final Linear
    lin_b = rn(ks[9], (1, DIM), 0.05)

    MXU_DTYPE = jnp.bfloat16   # v6e/v7x MXU fast path; use jnp.float32 for exact numerics

    logits = tree_lstm_forward(x, A_np, level_np, h0, c0,
                               w_iou, u_iou, b_iou, u_f_w, u_f_b, lin_w, lin_b,
                               mxu_dtype=MXU_DTYPE)
    logits = jax.block_until_ready(logits)

    ref = ref_forward_numpy(np.asarray(x, np.float64), children, level,
                            np.asarray(h0, np.float64), np.asarray(c0, np.float64),
                            np.asarray(w_iou, np.float64), np.asarray(u_iou, np.float64),
                            np.asarray(b_iou, np.float64), np.asarray(u_f_w, np.float64),
                            np.asarray(u_f_b, np.float64), np.asarray(lin_w, np.float64),
                            np.asarray(lin_b, np.float64))

    assert logits.shape == (N, DIM)
    # bf16 MXU operands (f32 accumulation) need a looser tolerance than f32 (perf review).
    tol = 5e-2 if jnp.dtype(MXU_DTYPE).itemsize < 4 else 1e-4
    np.testing.assert_allclose(np.asarray(logits), ref, rtol=tol, atol=tol)
    print("KERNEL_OK")
</pallas_src>

<mosaic_0001>
module attributes {stable_mosaic.version = 11 : i64} {
  func.func @_tree_lstm_kernel(%arg0: memref<64x128xbf16, #tpu.memory_space<vmem>>, %arg1: memref<64x64xbf16, #tpu.memory_space<vmem>>, %arg2: memref<64x128xbf16, #tpu.memory_space<vmem>>, %arg3: memref<64x128xf32, #tpu.memory_space<vmem>>, %arg4: memref<128x384xbf16, #tpu.memory_space<vmem>>, %arg5: memref<128x384xbf16, #tpu.memory_space<vmem>>, %arg6: memref<1x384xf32, #tpu.memory_space<vmem>>, %arg7: memref<128x128xbf16, #tpu.memory_space<vmem>>, %arg8: memref<1x128xf32, #tpu.memory_space<vmem>>, %arg9: memref<128x128xbf16, #tpu.memory_space<vmem>>, %arg10: memref<1x128xf32, #tpu.memory_space<vmem>>, %arg11: memref<64x128xf32, #tpu.memory_space<vmem>>, %arg12: memref<64x256xbf16, #tpu.memory_space<vmem>>, %arg13: memref<64x128xf32, #tpu.memory_space<vmem>>, %arg14: memref<64x384xf32, #tpu.memory_space<vmem>>) attributes {dimension_semantics = [], scalar_prefetch = 0 : i64, scratch_operands = 3 : i64, tpu.core_type = #tpu.core_type<tc>} {
    %c0 = arith.constant 0 : index
    %c0_0 = arith.constant 0 : index
    %0 = vector.load %arg0[%c0, %c0_0] : memref<64x128xbf16, #tpu.memory_space<vmem>>, vector<64x128xbf16>
    %c0_1 = arith.constant 0 : index
    %c0_2 = arith.constant 0 : index
    %1 = vector.load %arg4[%c0_1, %c0_2] : memref<128x384xbf16, #tpu.memory_space<vmem>>, vector<128x384xbf16>
    %cst = arith.constant dense<0.000000e+00> : vector<64x384xf32>
    %2 = tpu.matmul %0, %1, %cst {dimension_numbers = #tpu.dot_dimension_numbers<[1], [0], [0], [1], [0, 0, 1, 1], [], []>} : vector<64x128xbf16>, vector<128x384xbf16>, vector<64x384xf32> -> vector<64x384xf32>
    %c0_3 = arith.constant 0 : index
    %c0_4 = arith.constant 0 : index
    %3 = vector.load %arg14[%c0_3, %c0_4] : memref<64x384xf32, #tpu.memory_space<vmem>>, vector<64x384xf32>
    tpu.vector_store %arg14[%c0_3, %c0_4], %2 {strides = array<i32>} : memref<64x384xf32, #tpu.memory_space<vmem>>, vector<64x384xf32>,
    %c0_5 = arith.constant 0 : index
    %c0_6 = arith.constant 0 : index
    %4 = vector.load %arg3[%c0_5, %c0_6] : memref<64x128xf32, #tpu.memory_space<vmem>>, vector<64x128xf32>
    %c0_7 = arith.constant 0 : index
    %c0_8 = arith.constant 0 : index
    %5 = vector.load %arg13[%c0_7, %c0_8] : memref<64x128xf32, #tpu.memory_space<vmem>>, vector<64x128xf32>
    tpu.vector_store %arg13[%c0_7, %c0_8], %4 {strides = array<i32>} : memref<64x128xf32, #tpu.memory_space<vmem>>, vector<64x128xf32>,
    %c0_9 = arith.constant 0 : index
    %c0_10 = arith.constant 0 : index
    %6 = vector.load %arg2[%c0_9, %c0_10] : memref<64x128xbf16, #tpu.memory_space<vmem>>, vector<64x128xbf16>
    %c0_11 = arith.constant 0 : index
    %c0_12 = arith.constant 0 : index
    %7 = vector.load %arg12[%c0_11, %c0_12] : memref<64x256xbf16, #tpu.memory_space<vmem>>, vector<64x128xbf16>
    tpu.vector_store %arg12[%c0_11, %c0_12], %6 {strides = array<i32>} : memref<64x256xbf16, #tpu.memory_space<vmem>>, vector<64x128xbf16>,
    %cst_13 = arith.constant 0.000000e+00 : bf16
    %8 = vector.broadcast %cst_13 : bf16 to vector<64x128xbf16>
    %c0_14 = arith.constant 0 : index
    %c128 = arith.constant 128 : index
    %9 = vector.load %arg12[%c0_14, %c128] : memref<64x256xbf16, #tpu.memory_space<vmem>>, vector<64x128xbf16>
    tpu.vector_store %arg12[%c0_14, %c128], %8 {strides = array<i32>} : memref<64x256xbf16, #tpu.memory_space<vmem>>, vector<64x128xbf16>,
    %c0_15 = arith.constant 0 : index
    %c0_16 = arith.constant 0 : index
    %10 = vector.load %arg14[%c0_15, %c0_16] : memref<64x384xf32, #tpu.memory_space<vmem>>, vector<16x384xf32>
    %c0_17 = arith.constant 0 : index
    %c0_18 = arith.constant 0 : index
    %11 = vector.load %arg6[%c0_17, %c0_18] : memref<1x384xf32, #tpu.memory_space<vmem>>, vector<1x384xf32>
    %12 = vector.broadcast %11 : vector<1x384xf32> to vector<16x384xf32>
    %13 = arith.addf %10, %12 : vector<16x384xf32>
    %14 = vector.extract_strided_slice %13 {offsets = [0, 0], sizes = [16, 128], strides = [1, 1]} : vector<16x384xf32> to vector<16x128xf32>
    %15 = arith.negf %14 : vector<16x128xf32>
    %16 = math.exp %15 : vector<16x128xf32>
    %cst_19 = arith.constant 1.000000e+00 : f32
    %17 = vector.broadcast %cst_19 : f32 to vector<16x128xf32>
    %18 = arith.addf %17, %16 : vector<16x128xf32>
    %19 = arith.divf %17, %18 : vector<16x128xf32>
    %20 = vector.extract_strided_slice %13 {offsets = [0, 128], sizes = [16, 128], strides = [1, 1]} : vector<16x384xf32> to vector<16x128xf32>
    %21 = arith.negf %20 : vector<16x128xf32>
    %22 = math.exp %21 : vector<16x128xf32>
    %cst_20 = arith.constant 1.000000e+00 : f32
    %23 = vector.broadcast %cst_20 : f32 to vector<16x128xf32>
    %24 = arith.addf %23, %22 : vector<16x128xf32>
    %25 = arith.divf %23, %24 : vector<16x128xf32>
    %26 = vector.extract_strided_slice %13 {offsets = [0, 256], sizes = [16, 128], strides = [1, 1]} : vector<16x384xf32> to vector<16x128xf32>
    %27 = math.tanh %26 : vector<16x128xf32>
    %28 = arith.mulf %19, %27 : vector<16x128xf32>
    %c0_21 = arith.constant 0 : index
    %c0_22 = arith.constant 0 : index
    %29 = vector.load %arg13[%c0_21, %c0_22] : memref<64x128xf32, #tpu.memory_space<vmem>>, vector<16x128xf32>
    %30 = arith.addf %28, %29 : vector<16x128xf32>
    %c0_23 = arith.constant 0 : index
    %c0_24 = arith.constant 0 : index
    %31 = vector.load %arg13[%c0_23, %c0_24] : memref<64x128xf32, #tpu.memory_space<vmem>>, vector<16x128xf32>
    tpu.vector_store %arg13[%c0_23, %c0_24], %30 {strides = array<i32>} : memref<64x128xf32, #tpu.memory_space<vmem>>, vector<16x128xf32>,
    %32 = math.tanh %30 : vector<16x128xf32>
    %33 = arith.mulf %25, %32 : vector<16x128xf32>
    %34 = arith.truncf %33 : vector<16x128xf32> to vector<16x128xbf16>
    %c0_25 = arith.constant 0 : index
    %c0_26 = arith.constant 0 : index
    %35 = vector.load %arg12[%c0_25, %c0_26] : memref<64x256xbf16, #tpu.memory_space<vmem>>, vector<16x128xbf16>
    tpu.vector_store %arg12[%c0_25, %c0_26], %34 {strides = array<i32>} : memref<64x256xbf16, #tpu.memory_space<vmem>>, vector<16x128xbf16>,
    %c0_27 = arith.constant 0 : index
    %c0_28 = arith.constant 0 : index
    %36 = vector.load %arg12[%c0_27, %c0_28] : memref<64x256xbf16, #tpu.memory_space<vmem>>, vector<16x128xbf16>
    %c0_29 = arith.constant 0 : index
    %c0_30 = arith.constant 0 : index
    %37 = vector.load %arg7[%c0_29, %c0_30] : memref<128x128xbf16, #tpu.memory_space<vmem>>, vector<128x128xbf16>
    %cst_31 = arith.constant dense<0.000000e+00> : vector<16x128xf32>
    %38 = tpu.matmul %36, %37, %cst_31 {dimension_numbers = #tpu.dot_dimension_numbers<[1], [0], [0], [1], [0, 0, 1, 1], [], []>} : vector<16x128xbf16>, vector<128x128xbf16>, vector<16x128xf32> -> vector<16x128xf32>
    %c0_32 = arith.constant 0 : index
    %c0_33 = arith.constant 0 : index
    %39 = vector.load %arg8[%c0_32, %c0_33] : memref<1x128xf32, #tpu.memory_space<vmem>>, vector<1x128xf32>
    %40 = vector.broadcast %39 : vector<1x128xf32> to vector<16x128xf32>
    %41 = arith.addf %38, %40 : vector<16x128xf32>
    %42 = arith.negf %41 : vector<16x128xf32>
    %43 = math.exp %42 : vector<16x128xf32>
    %cst_34 = arith.constant 1.000000e+00 : f32
    %44 = vector.broadcast %cst_34 : f32 to vector<16x128xf32>
    %45 = arith.addf %44, %43 : vector<16x128xf32>
    %46 = arith.divf %44, %45 : vector<16x128xf32>
    %c0_35 = arith.constant 0 : index
    %c0_36 = arith.constant 0 : index
    %47 = vector.load %arg13[%c0_35, %c0_36] : memref<64x128xf32, #tpu.memory_space<vmem>>, vector<16x128xf32>
    %48 = arith.mulf %46, %47 : vector<16x128xf32>
    %49 = arith.truncf %48 : vector<16x128xf32> to vector<16x128xbf16>
    %c0_37 = arith.constant 0 : index
    %c128_38 = arith.constant 128 : index
    %50 = vector.load %arg12[%c0_37, %c128_38] : memref<64x256xbf16, #tpu.memory_space<vmem>>, vector<16x128xbf16>
    tpu.vector_store %arg12[%c0_37, %c128_38], %49 {strides = array<i32>} : memref<64x256xbf16, #tpu.memory_space<vmem>>, vector<16x128xbf16>,
    %c16 = arith.constant 16 : index
    %c0_39 = arith.constant 0 : index
    %51 = vector.load %arg1[%c16, %c0_39] : memref<64x64xbf16, #tpu.memory_space<vmem>>, vector<16x64xbf16>
    %c0_40 = arith.constant 0 : index
    %c0_41 = arith.constant 0 : index
    %52 = vector.load %arg12[%c0_40, %c0_41] : memref<64x256xbf16, #tpu.memory_space<vmem>>, vector<64x256xbf16>
    %cst_42 = arith.constant dense<0.000000e+00> : vector<16x256xf32>
    %53 = tpu.matmul %51, %52, %cst_42 {dimension_numbers = #tpu.dot_dimension_numbers<[1], [0], [0], [1], [0, 0, 1, 1], [], []>} : vector<16x64xbf16>, vector<64x256xbf16>, vector<16x256xf32> -> vector<16x256xf32>
    %54 = vector.extract_strided_slice %53 {offsets = [0, 0], sizes = [16, 128], strides = [1, 1]} : vector<16x256xf32> to vector<16x128xf32>
    %55 = vector.extract_strided_slice %53 {offsets = [0, 128], sizes = [16, 128], strides = [1, 1]} : vector<16x256xf32> to vector<16x128xf32>
    %56 = arith.truncf %54 : vector<16x128xf32> to vector<16x128xbf16>
    %c0_43 = arith.constant 0 : index
    %c0_44 = arith.constant 0 : index
    %57 = vector.load %arg5[%c0_43, %c0_44] : memref<128x384xbf16, #tpu.memory_space<vmem>>, vector<128x384xbf16>
    %cst_45 = arith.constant dense<0.000000e+00> : vector<16x384xf32>
    %58 = tpu.matmul %56, %57, %cst_45 {dimension_numbers = #tpu.dot_dimension_numbers<[1], [0], [0], [1], [0, 0, 1, 1], [], []>} : vector<16x128xbf16>, vector<128x384xbf16>, vector<16x384xf32> -> vector<16x384xf32>
    %c16_46 = arith.constant 16 : index
    %c0_47 = arith.constant 0 : index
    %59 = vector.load %arg14[%c16_46, %c0_47] : memref<64x384xf32, #tpu.memory_space<vmem>>, vector<16x384xf32>
    tpu.vector_store %arg14[%c16_46, %c0_47], %58 {strides = array<i32>} : memref<64x384xf32, #tpu.memory_space<vmem>>, vector<16x384xf32>,
    %c16_48 = arith.constant 16 : index
    %c0_49 = arith.constant 0 : index
    %60 = vector.load %arg13[%c16_48, %c0_49] : memref<64x128xf32, #tpu.memory_space<vmem>>, vector<16x128xf32>
    tpu.vector_store %arg13[%c16_48, %c0_49], %55 {strides = array<i32>} : memref<64x128xf32, #tpu.memory_space<vmem>>, vector<16x128xf32>,
    %c16_50 = arith.constant 16 : index
    %c0_51 = arith.constant 0 : index
    %61 = vector.load %arg14[%c16_50, %c0_51] : memref<64x384xf32, #tpu.memory_space<vmem>>, vector<16x384xf32>
    %c0_52 = arith.constant 0 : index
    %c0_53 = arith.constant 0 : index
    %62 = vector.load %arg6[%c0_52, %c0_53] : memref<1x384xf32, #tpu.memory_space<vmem>>, vector<1x384xf32>
    %63 = vector.broadcast %62 : vector<1x384xf32> to vector<16x384xf32>
    %64 = arith.addf %61, %63 : vector<16x384xf32>
    %65 = vector.extract_strided_slice %64 {offsets = [0, 0], sizes = [16, 128], strides = [1, 1]} : vector<16x384xf32> to vector<16x128xf32>
    %66 = arith.negf %65 : vector<16x128xf32>
    %67 = math.exp %66 : vector<16x128xf32>
    %cst_54 = arith.constant 1.000000e+00 : f32
    %68 = vector.broadcast %cst_54 : f32 to vector<16x128xf32>
    %69 = arith.addf %68, %67 : vector<16x128xf32>
    %70 = arith.divf %68, %69 : vector<16x128xf32>
    %71 = vector.extract_strided_slice %64 {offsets = [0, 128], sizes = [16, 128], strides = [1, 1]} : vector<16x384xf32> to vector<16x128xf32>
    %72 = arith.negf %71 : vector<16x128xf32>
    %73 = math.exp %72 : vector<16x128xf32>
    %cst_55 = arith.constant 1.000000e+00 : f32
    %74 = vector.broadcast %cst_55 : f32 to vector<16x128xf32>
    %75 = arith.addf %74, %73 : vector<16x128xf32>
    %76 = arith.divf %74, %75 : vector<16x128xf32>
    %77 = vector.extract_strided_slice %64 {offsets = [0, 256], sizes = [16, 128], strides = [1, 1]} : vector<16x384xf32> to vector<16x128xf32>
    %78 = math.tanh %77 : vector<16x128xf32>
    %79 = arith.mulf %70, %78 : vector<16x128xf32>
    %c16_56 = arith.constant 16 : index
    %c0_57 = arith.constant 0 : index
    %80 = vector.load %arg13[%c16_56, %c0_57] : memref<64x128xf32, #tpu.memory_space<vmem>>, vector<16x128xf32>
    %81 = arith.addf %79, %80 : vector<16x128xf32>
    %c16_58 = arith.constant 16 : index
    %c0_59 = arith.constant 0 : index
    %82 = vector.load %arg13[%c16_58, %c0_59] : memref<64x128xf32, #tpu.memory_space<vmem>>, vector<16x128xf32>
    tpu.vector_store %arg13[%c16_58, %c0_59], %81 {strides = array<i32>} : memref<64x128xf32, #tpu.memory_space<vmem>>, vector<16x128xf32>,
    %83 = math.tanh %81 : vector<16x128xf32>
    %84 = arith.mulf %76, %83 : vector<16x128xf32>
    %85 = arith.truncf %84 : vector<16x128xf32> to vector<16x128xbf16>
    %c16_60 = arith.constant 16 : index
    %c0_61 = arith.constant 0 : index
    %86 = vector.load %arg12[%c16_60, %c0_61] : memref<64x256xbf16, #tpu.memory_space<vmem>>, vector<16x128xbf16>
    tpu.vector_store %arg12[%c16_60, %c0_61], %85 {strides = array<i32>} : memref<64x256xbf16, #tpu.memory_space<vmem>>, vector<16x128xbf16>,
    %c0_62 = arith.constant 0 : index
    %c0_63 = arith.constant 0 : index
    %87 = vector.load %arg12[%c0_62, %c0_63] : memref<64x256xbf16, #tpu.memory_space<vmem>>, vector<32x128xbf16>
    %c0_64 = arith.constant 0 : index
    %c0_65 = arith.constant 0 : index
    %88 = vector.load %arg7[%c0_64, %c0_65] : memref<128x128xbf16, #tpu.memory_space<vmem>>, vector<128x128xbf16>
    %cst_66 = arith.constant dense<0.000000e+00> : vector<32x128xf32>
    %89 = tpu.matmul %87, %88, %cst_66 {dimension_numbers = #tpu.dot_dimension_numbers<[1], [0], [0], [1], [0, 0, 1, 1], [], []>} : vector<32x128xbf16>, vector<128x128xbf16>, vector<32x128xf32> -> vector<32x128xf32>
    %c0_67 = arith.constant 0 : index
    %c0_68 = arith.constant 0 : index
    %90 = vector.load %arg8[%c0_67, %c0_68] : memref<1x128xf32, #tpu.memory_space<vmem>>, vector<1x128xf32>
    %91 = vector.broadcast %90 : vector<1x128xf32> to vector<32x128xf32>
    %92 = arith.addf %89, %91 : vector<32x128xf32>
    %93 = arith.negf %92 : vector<32x128xf32>
    %94 = math.exp %93 : vector<32x128xf32>
    %cst_69 = arith.constant 1.000000e+00 : f32
    %95 = vector.broadcast %cst_69 : f32 to vector<32x128xf32>
    %96 = arith.addf %95, %94 : vector<32x128xf32>
    %97 = arith.divf %95, %96 : vector<32x128xf32>
    %c0_70 = arith.constant 0 : index
    %c0_71 = arith.constant 0 : index
    %98 = vector.load %arg13[%c0_70, %c0_71] : memref<64x128xf32, #tpu.memory_space<vmem>>, vector<32x128xf32>
    %99 = arith.mulf %97, %98 : vector<32x128xf32>
    %100 = arith.truncf %99 : vector<32x128xf32> to vector<32x128xbf16>
    %c0_72 = arith.constant 0 : index
    %c128_73 = arith.constant 128 : index
    %101 = vector.load %arg12[%c0_72, %c128_73] : memref<64x256xbf16, #tpu.memory_space<vmem>>, vector<32x128xbf16>
    tpu.vector_store %arg12[%c0_72, %c128_73], %100 {strides = array<i32>} : memref<64x256xbf16, #tpu.memory_space<vmem>>, vector<32x128xbf16>,
    %c32 = arith.constant 32 : index
    %c0_74 = arith.constant 0 : index
    %102 = vector.load %arg1[%c32, %c0_74] : memref<64x64xbf16, #tpu.memory_space<vmem>>, vector<16x64xbf16>
    %c0_75 = arith.constant 0 : index
    %c0_76 = arith.constant 0 : index
    %103 = vector.load %arg12[%c0_75, %c0_76] : memref<64x256xbf16, #tpu.memory_space<vmem>>, vector<64x256xbf16>
    %cst_77 = arith.constant dense<0.000000e+00> : vector<16x256xf32>
    %104 = tpu.matmul %102, %103, %cst_77 {dimension_numbers = #tpu.dot_dimension_numbers<[1], [0], [0], [1], [0, 0, 1, 1], [], []>} : vector<16x64xbf16>, vector<64x256xbf16>, vector<16x256xf32> -> vector<16x256xf32>
    %105 = vector.extract_strided_slice %104 {offsets = [0, 0], sizes = [16, 128], strides = [1, 1]} : vector<16x256xf32> to vector<16x128xf32>
    %106 = vector.extract_strided_slice %104 {offsets = [0, 128], sizes = [16, 128], strides = [1, 1]} : vector<16x256xf32> to vector<16x128xf32>
    %107 = arith.truncf %105 : vector<16x128xf32> to vector<16x128xbf16>
    %c0_78 = arith.constant 0 : index
    %c0_79 = arith.constant 0 : index
    %108 = vector.load %arg5[%c0_78, %c0_79] : memref<128x384xbf16, #tpu.memory_space<vmem>>, vector<128x384xbf16>
    %cst_80 = arith.constant dense<0.000000e+00> : vector<16x384xf32>
    %109 = tpu.matmul %107, %108, %cst_80 {dimension_numbers = #tpu.dot_dimension_numbers<[1], [0], [0], [1], [0, 0, 1, 1], [], []>} : vector<16x128xbf16>, vector<128x384xbf16>, vector<16x384xf32> -> vector<16x384xf32>
    %c32_81 = arith.constant 32 : index
    %c0_82 = arith.constant 0 : index
    %110 = vector.load %arg14[%c32_81, %c0_82] : memref<64x384xf32, #tpu.memory_space<vmem>>, vector<16x384xf32>
    tpu.vector_store %arg14[%c32_81, %c0_82], %109 {strides = array<i32>} : memref<64x384xf32, #tpu.memory_space<vmem>>, vector<16x384xf32>,
    %c32_83 = arith.constant 32 : index
    %c0_84 = arith.constant 0 : index
    %111 = vector.load %arg13[%c32_83, %c0_84] : memref<64x128xf32, #tpu.memory_space<vmem>>, vector<16x128xf32>
    tpu.vector_store %arg13[%c32_83, %c0_84], %106 {strides = array<i32>} : memref<64x128xf32, #tpu.memory_space<vmem>>, vector<16x128xf32>,
    %c32_85 = arith.constant 32 : index
    %c0_86 = arith.constant 0 : index
    %112 = vector.load %arg14[%c32_85, %c0_86] : memref<64x384xf32, #tpu.memory_space<vmem>>, vector<16x384xf32>
    %c0_87 = arith.constant 0 : index
    %c0_88 = arith.constant 0 : index
    %113 = vector.load %arg6[%c0_87, %c0_88] : memref<1x384xf32, #tpu.memory_space<vmem>>, vector<1x384xf32>
    %114 = vector.broadcast %113 : vector<1x384xf32> to vector<16x384xf32>
    %115 = arith.addf %112, %114 : vector<16x384xf32>
    %116 = vector.extract_strided_slice %115 {offsets = [0, 0], sizes = [16, 128], strides = [1, 1]} : vector<16x384xf32> to vector<16x128xf32>
    %117 = arith.negf %116 : vector<16x128xf32>
    %118 = math.exp %117 : vector<16x128xf32>
    %cst_89 = arith.constant 1.000000e+00 : f32
    %119 = vector.broadcast %cst_89 : f32 to vector<16x128xf32>
    %120 = arith.addf %119, %118 : vector<16x128xf32>
    %121 = arith.divf %119, %120 : vector<16x128xf32>
    %122 = vector.extract_strided_slice %115 {offsets = [0, 128], sizes = [16, 128], strides = [1, 1]} : vector<16x384xf32> to vector<16x128xf32>
    %123 = arith.negf %122 : vector<16x128xf32>
    %124 = math.exp %123 : vector<16x128xf32>
    %cst_90 = arith.constant 1.000000e+00 : f32
    %125 = vector.broadcast %cst_90 : f32 to vector<16x128xf32>
    %126 = arith.addf %125, %124 : vector<16x128xf32>
    %127 = arith.divf %125, %126 : vector<16x128xf32>
    %128 = vector.extract_strided_slice %115 {offsets = [0, 256], sizes = [16, 128], strides = [1, 1]} : vector<16x384xf32> to vector<16x128xf32>
    %129 = math.tanh %128 : vector<16x128xf32>
    %130 = arith.mulf %121, %129 : vector<16x128xf32>
    %c32_91 = arith.constant 32 : index
    %c0_92 = arith.constant 0 : index
    %131 = vector.load %arg13[%c32_91, %c0_92] : memref<64x128xf32, #tpu.memory_space<vmem>>, vector<16x128xf32>
    %132 = arith.addf %130, %131 : vector<16x128xf32>
    %c32_93 = arith.constant 32 : index
    %c0_94 = arith.constant 0 : index
    %133 = vector.load %arg13[%c32_93, %c0_94] : memref<64x128xf32, #tpu.memory_space<vmem>>, vector<16x128xf32>
    tpu.vector_store %arg13[%c32_93, %c0_94], %132 {strides = array<i32>} : memref<64x128xf32, #tpu.memory_space<vmem>>, vector<16x128xf32>,
    %134 = math.tanh %132 : vector<16x128xf32>
    %135 = arith.mulf %127, %134 : vector<16x128xf32>
    %136 = arith.truncf %135 : vector<16x128xf32> to vector<16x128xbf16>
    %c32_95 = arith.constant 32 : index
    %c0_96 = arith.constant 0 : index
    %137 = vector.load %arg12[%c32_95, %c0_96] : memref<64x256xbf16, #tpu.memory_space<vmem>>, vector<16x128xbf16>
    tpu.vector_store %arg12[%c32_95, %c0_96], %136 {strides = array<i32>} : memref<64x256xbf16, #tpu.memory_space<vmem>>, vector<16x128xbf16>,
    %c0_97 = arith.constant 0 : index
    %c0_98 = arith.constant 0 : index
    %138 = vector.load %arg12[%c0_97, %c0_98] : memref<64x256xbf16, #tpu.memory_space<vmem>>, vector<48x128xbf16>
    %c0_99 = arith.constant 0 : index
    %c0_100 = arith.constant 0 : index
    %139 = vector.load %arg7[%c0_99, %c0_100] : memref<128x128xbf16, #tpu.memory_space<vmem>>, vector<128x128xbf16>
    %cst_101 = arith.constant dense<0.000000e+00> : vector<48x128xf32>
    %140 = tpu.matmul %138, %139, %cst_101 {dimension_numbers = #tpu.dot_dimension_numbers<[1], [0], [0], [1], [0, 0, 1, 1], [], []>} : vector<48x128xbf16>, vector<128x128xbf16>, vector<48x128xf32> -> vector<48x128xf32>
    %c0_102 = arith.constant 0 : index
    %c0_103 = arith.constant 0 : index
    %141 = vector.load %arg8[%c0_102, %c0_103] : memref<1x128xf32, #tpu.memory_space<vmem>>, vector<1x128xf32>
    %142 = vector.broadcast %141 : vector<1x128xf32> to vector<48x128xf32>
    %143 = arith.addf %140, %142 : vector<48x128xf32>
    %144 = arith.negf %143 : vector<48x128xf32>
    %145 = math.exp %144 : vector<48x128xf32>
    %cst_104 = arith.constant 1.000000e+00 : f32
    %146 = vector.broadcast %cst_104 : f32 to vector<48x128xf32>
    %147 = arith.addf %146, %145 : vector<48x128xf32>
    %148 = arith.divf %146, %147 : vector<48x128xf32>
    %c0_105 = arith.constant 0 : index
    %c0_106 = arith.constant 0 : index
    %149 = vector.load %arg13[%c0_105, %c0_106] : memref<64x128xf32, #tpu.memory_space<vmem>>, vector<48x128xf32>
    %150 = arith.mulf %148, %149 : vector<48x128xf32>
    %151 = arith.truncf %150 : vector<48x128xf32> to vector<48x128xbf16>
    %c0_107 = arith.constant 0 : index
    %c128_108 = arith.constant 128 : index
    %152 = vector.load %arg12[%c0_107, %c128_108] : memref<64x256xbf16, #tpu.memory_space<vmem>>, vector<48x128xbf16>
    tpu.vector_store %arg12[%c0_107, %c128_108], %151 {strides = array<i32>} : memref<64x256xbf16, #tpu.memory_space<vmem>>, vector<48x128xbf16>,
    %c48 = arith.constant 48 : index
    %c0_109 = arith.constant 0 : index
    %153 = vector.load %arg1[%c48, %c0_109] : memref<64x64xbf16, #tpu.memory_space<vmem>>, vector<16x64xbf16>
    %c0_110 = arith.constant 0 : index
    %c0_111 = arith.constant 0 : index
    %154 = vector.load %arg12[%c0_110, %c0_111] : memref<64x256xbf16, #tpu.memory_space<vmem>>, vector<64x256xbf16>
    %cst_112 = arith.constant dense<0.000000e+00> : vector<16x256xf32>
    %155 = tpu.matmul %153, %154, %cst_112 {dimension_numbers = #tpu.dot_dimension_numbers<[1], [0], [0], [1], [0, 0, 1, 1], [], []>} : vector<16x64xbf16>, vector<64x256xbf16>, vector<16x256xf32> -> vector<16x256xf32>
    %156 = vector.extract_strided_slice %155 {offsets = [0, 0], sizes = [16, 128], strides = [1, 1]} : vector<16x256xf32> to vector<16x128xf32>
    %157 = vector.extract_strided_slice %155 {offsets = [0, 128], sizes = [16, 128], strides = [1, 1]} : vector<16x256xf32> to vector<16x128xf32>
    %158 = arith.truncf %156 : vector<16x128xf32> to vector<16x128xbf16>
    %c0_113 = arith.constant 0 : index
    %c0_114 = arith.constant 0 : index
    %159 = vector.load %arg5[%c0_113, %c0_114] : memref<128x384xbf16, #tpu.memory_space<vmem>>, vector<128x384xbf16>
    %cst_115 = arith.constant dense<0.000000e+00> : vector<16x384xf32>
    %160 = tpu.matmul %158, %159, %cst_115 {dimension_numbers = #tpu.dot_dimension_numbers<[1], [0], [0], [1], [0, 0, 1, 1], [], []>} : vector<16x128xbf16>, vector<128x384xbf16>, vector<16x384xf32> -> vector<16x384xf32>
    %c48_116 = arith.constant 48 : index
    %c0_117 = arith.constant 0 : index
    %161 = vector.load %arg14[%c48_116, %c0_117] : memref<64x384xf32, #tpu.memory_space<vmem>>, vector<16x384xf32>
    tpu.vector_store %arg14[%c48_116, %c0_117], %160 {strides = array<i32>} : memref<64x384xf32, #tpu.memory_space<vmem>>, vector<16x384xf32>,
    %c48_118 = arith.constant 48 : index
    %c0_119 = arith.constant 0 : index
    %162 = vector.load %arg13[%c48_118, %c0_119] : memref<64x128xf32, #tpu.memory_space<vmem>>, vector<16x128xf32>
    tpu.vector_store %arg13[%c48_118, %c0_119], %157 {strides = array<i32>} : memref<64x128xf32, #tpu.memory_space<vmem>>, vector<16x128xf32>,
    %c48_120 = arith.constant 48 : index
    %c0_121 = arith.constant 0 : index
    %163 = vector.load %arg14[%c48_120, %c0_121] : memref<64x384xf32, #tpu.memory_space<vmem>>, vector<16x384xf32>
    %c0_122 = arith.constant 0 : index
    %c0_123 = arith.constant 0 : index
    %164 = vector.load %arg6[%c0_122, %c0_123] : memref<1x384xf32, #tpu.memory_space<vmem>>, vector<1x384xf32>
    %165 = vector.broadcast %164 : vector<1x384xf32> to vector<16x384xf32>
    %166 = arith.addf %163, %165 : vector<16x384xf32>
    %167 = vector.extract_strided_slice %166 {offsets = [0, 0], sizes = [16, 128], strides = [1, 1]} : vector<16x384xf32> to vector<16x128xf32>
    %168 = arith.negf %167 : vector<16x128xf32>
    %169 = math.exp %168 : vector<16x128xf32>
    %cst_124 = arith.constant 1.000000e+00 : f32
    %170 = vector.broadcast %cst_124 : f32 to vector<16x128xf32>
    %171 = arith.addf %170, %169 : vector<16x128xf32>
    %172 = arith.divf %170, %171 : vector<16x128xf32>
    %173 = vector.extract_strided_slice %166 {offsets = [0, 128], sizes = [16, 128], strides = [1, 1]} : vector<16x384xf32> to vector<16x128xf32>
    %174 = arith.negf %173 : vector<16x128xf32>
    %175 = math.exp %174 : vector<16x128xf32>
    %cst_125 = arith.constant 1.000000e+00 : f32
    %176 = vector.broadcast %cst_125 : f32 to vector<16x128xf32>
    %177 = arith.addf %176, %175 : vector<16x128xf32>
    %178 = arith.divf %176, %177 : vector<16x128xf32>
    %179 = vector.extract_strided_slice %166 {offsets = [0, 256], sizes = [16, 128], strides = [1, 1]} : vector<16x384xf32> to vector<16x128xf32>
    %180 = math.tanh %179 : vector<16x128xf32>
    %181 = arith.mulf %172, %180 : vector<16x128xf32>
    %c48_126 = arith.constant 48 : index
    %c0_127 = arith.constant 0 : index
    %182 = vector.load %arg13[%c48_126, %c0_127] : memref<64x128xf32, #tpu.memory_space<vmem>>, vector<16x128xf32>
    %183 = arith.addf %181, %182 : vector<16x128xf32>
    %c48_128 = arith.constant 48 : index
    %c0_129 = arith.constant 0 : index
    %184 = vector.load %arg13[%c48_128, %c0_129] : memref<64x128xf32, #tpu.memory_space<vmem>>, vector<16x128xf32>
    tpu.vector_store %arg13[%c48_128, %c0_129], %183 {strides = array<i32>} : memref<64x128xf32, #tpu.memory_space<vmem>>, vector<16x128xf32>,
    %185 = math.tanh %183 : vector<16x128xf32>
    %186 = arith.mulf %178, %185 : vector<16x128xf32>
    %187 = arith.truncf %186 : vector<16x128xf32> to vector<16x128xbf16>
    %c48_130 = arith.constant 48 : index
    %c0_131 = arith.constant 0 : index
    %188 = vector.load %arg12[%c48_130, %c0_131] : memref<64x256xbf16, #tpu.memory_space<vmem>>, vector<16x128xbf16>
    tpu.vector_store %arg12[%c48_130, %c0_131], %187 {strides = array<i32>} : memref<64x256xbf16, #tpu.memory_space<vmem>>, vector<16x128xbf16>,
    %c0_132 = arith.constant 0 : index
    %c0_133 = arith.constant 0 : index
    %189 = vector.load %arg12[%c0_132, %c0_133] : memref<64x256xbf16, #tpu.memory_space<vmem>>, vector<64x128xbf16>
    %c0_134 = arith.constant 0 : index
    %c0_135 = arith.constant 0 : index
    %190 = vector.load %arg9[%c0_134, %c0_135] : memref<128x128xbf16, #tpu.memory_space<vmem>>, vector<128x128xbf16>
    %cst_136 = arith.constant dense<0.000000e+00> : vector<64x128xf32>
    %191 = tpu.matmul %189, %190, %cst_136 {dimension_numbers = #tpu.dot_dimension_numbers<[1], [0], [0], [1], [0, 0, 1, 1], [], []>} : vector<64x128xbf16>, vector<128x128xbf16>, vector<64x128xf32> -> vector<64x128xf32>
    %c0_137 = arith.constant 0 : index
    %c0_138 = arith.constant 0 : index
    %192 = vector.load %arg10[%c0_137, %c0_138] : memref<1x128xf32, #tpu.memory_space<vmem>>, vector<1x128xf32>
    %193 = vector.broadcast %192 : vector<1x128xf32> to vector<64x128xf32>
    %194 = arith.addf %191, %193 : vector<64x128xf32>
    %c0_139 = arith.constant 0 : index
    %c0_140 = arith.constant 0 : index
    %195 = vector.load %arg11[%c0_139, %c0_140] : memref<64x128xf32, #tpu.memory_space<vmem>>, vector<64x128xf32>
    tpu.vector_store %arg11[%c0_139, %c0_140], %194 {strides = array<i32>} : memref<64x128xf32, #tpu.memory_space<vmem>>, vector<64x128xf32>,
    return
  }
}

</mosaic_0001>

<llo_original>
// kernel: tpu_custom_call.1
$region0: #{tpu_custom_call.1}
  #allocation0 [shape = 'u32[]', space=smem, size = 0x4, offset = 0x4, fixed_abs, tag = 'smem constant byte address 0x4 - core index']
  #allocation1 [shape = 'u32[144,128]{1,0:T(1,128)}', space=vmem, size = 0x12000, scoped, tag = 'internal scratch']
  #allocation2 [shape = 'bf16[64,256]{1,0:T(16,128)(2,1)}', space=vmem, size = 0x8000, scoped, tag = 'scratch operand']
  #allocation3 [shape = 'f32[64,128]{1,0:T(8,128)}', space=vmem, size = 0x8000, scoped, tag = 'scratch operand']
  #allocation4 [shape = 'f32[64,384]{1,0:T(8,128)}', space=vmem, size = 0x18000, scoped, tag = 'scratch operand']
  %s0 = inlined_call_operand.hbm [shape: bf16[64,128], index: 0, kind: input, shape index: {}]
  %s1 = inlined_call_operand.hbm [shape: bf16[64,64], index: 1, kind: input, shape index: {}]
  %s2 = inlined_call_operand.hbm [shape: bf16[64,128], index: 2, kind: input, shape index: {}]
  %s3 = inlined_call_operand.hbm [shape: f32[64,128], index: 3, kind: input, shape index: {}]
  %s4 = inlined_call_operand.hbm [shape: bf16[128,384], index: 4, kind: input, shape index: {}]
  %s5 = inlined_call_operand.hbm [shape: bf16[128,384], index: 5, kind: input, shape index: {}]
  %s6 = inlined_call_operand.vmem [shape: f32[1,384], index: 6, kind: input, shape index: {}]
  %s7 = inlined_call_operand.hbm [shape: bf16[128,128], index: 7, kind: input, shape index: {}]
  %s8 = inlined_call_operand.vmem [shape: f32[1,128], index: 8, kind: input, shape index: {}]
  %s9 = inlined_call_operand.hbm [shape: bf16[128,128], index: 9, kind: input, shape index: {}]
  %s10 = inlined_call_operand.vmem [shape: f32[1,128], index: 10, kind: input, shape index: {}]
  %s11 = inlined_call_operand.hbm [shape: f32[64,128], index: 11, kind: output, shape index: {}]
  %s12 = sld [smem:[#allocation0]]
  $region86: #{tpu_custom_call.1} parent=0
    _
  %s14 = ssub.s32 1, %s12
  %s15 = scalar_select 0, %s14, %s12
  $region1: #{tpu_custom_call.1} parent=0
    #allocation5 [shape = 'u8[16384]{0}', space=vmem, size = 0x4000, scoped, tag = 'input window, operand 0, single buffered']
    #allocation6 [shape = 's32[1]{0}', space=sflag, size = 0x4, scoped, tag = 'scoped memory for tpu_custom_call.1']
    #allocation7 [shape = 's32[1]{0}', space=sflag, size = 0x4, scoped, tag = 'scoped memory for tpu_custom_call.1']
    #allocation8 [shape = 'u8[16384]{0}', space=vmem, size = 0x4000, scoped, tag = 'input window, operand 1, single buffered']
    #allocation9 [shape = 's32[1]{0}', space=sflag, size = 0x4, scoped, tag = 'scoped memory for tpu_custom_call.1']
    #allocation10 [shape = 'u8[16384]{0}', space=vmem, size = 0x4000, scoped, tag = 'input window, operand 2, single buffered']
    #allocation11 [shape = 'u8[32768]{0}', space=vmem, size = 0x8000, scoped, tag = 'input window, operand 3, single buffered']
    #allocation12 [shape = 's32[1]{0}', space=sflag, size = 0x4, scoped, tag = 'scoped memory for tpu_custom_call.1']
    #allocation13 [shape = 'u8[98304]{0}', space=vmem, size = 0x18000, scoped, tag = 'input window, operand 4, single buffered']
    #allocation14 [shape = 'u8[98304]{0}', space=vmem, size = 0x18000, scoped, tag = 'input window, operand 5, single buffered']
    #allocation15 [shape = 's32[1]{0}', space=sflag, size = 0x4, scoped, tag = 'scoped memory for tpu_custom_call.1']
    #allocation16 [shape = 'u8[32768]{0}', space=vmem, size = 0x8000, scoped, tag = 'input window, operand 7, single buffered']
    #allocation17 [shape = 'u8[32768]{0}', space=vmem, size = 0x8000, scoped, tag = 'input window, operand 9, single buffered']
    #allocation18 [shape = 's32[1]{0}', space=sflag, size = 0x4, scoped, tag = 'scoped memory for tpu_custom_call.1']
    #allocation19 [shape = 'u8[32768]{0}', space=vmem, size = 0x8000, scoped, tag = 'output window, operand 0, single buffered']
    %16 = vsyncpa [#allocation6], 0
    %17 = vsyncpa [#allocation9], 0
    %18 = vsyncpa [#allocation12], 0
    %19 = vsyncpa [#allocation15], 0
    %20 = vsyncpa [#allocation18], 0
    %21 = vsyncpa [#allocation7], 0
    // Predicated region
    $region2: #{tpu_custom_call.1} parent=1 // pred_check
      _
    $region3: #{tpu_custom_call.1} parent=1 // pred_check_branch
      %23 = sbr.rel (0) target = $region5
    $region4: #{tpu_custom_call.1} parent=1 // pred_region
      %s25 = ssub.s32 512, 512
      %26 = vsyncadd [#allocation6], %s25
      %s27 = sshll.u32 [#allocation5], 4
      %s28 = int_to_ptr.vmem [resolvable:$true] %s27
      %33 = dma.hbm_to_vmem [thread:$0]  %s0, 512, %s28, [#allocation6], 64, 64, 4
    $region5: #{tpu_custom_call.1} parent=1 // pred_fallthru
      _
    // Predicated region
    $region6: #{tpu_custom_call.1} parent=1 // pred_check
      _
    $region7: #{tpu_custom_call.1} parent=1 // pred_check_branch
      %35 = sbr.rel (0) target = $region9
    $region8: #{tpu_custom_call.1} parent=1 // pred_region
      %s37 = ssub.s32 512, 512
      %38 = vsyncadd [#allocation9], %s37
      %s39 = sshll.u32 [#allocation8], 4
      %s40 = int_to_ptr.vmem [resolvable:$true] %s39
      %45 = dma.hbm_to_vmem [thread:$0]  %s1, 512, %s40, [#allocation9], 64, 64, 4
    $region9: #{tpu_custom_call.1} parent=1 // pred_fallthru
      _
    // Predicated region
    $region10: #{tpu_custom_call.1} parent=1 // pred_check
      _
    $region11: #{tpu_custom_call.1} parent=1 // pred_check_branch
      %47 = sbr.rel (0) target = $region13
    $region12: #{tpu_custom_call.1} parent=1 // pred_region
      %s49 = ssub.s32 512, 512
      %50 = vsyncadd [#allocation9], %s49
      %s51 = sshll.u32 [#allocation10], 4
      %s52 = int_to_ptr.vmem [resolvable:$true] %s51
      %57 = dma.hbm_to_vmem [thread:$0]  %s2, 512, %s52, [#allocation9], 64, 64, 4
    $region13: #{tpu_custom_call.1} parent=1 // pred_fallthru
      _
    // Predicated region
    $region14: #{tpu_custom_call.1} parent=1 // pred_check
      _
    $region15: #{tpu_custom_call.1} parent=1 // pred_check_branch
      %59 = sbr.rel (0) target = $region17
    $region16: #{tpu_custom_call.1} parent=1 // pred_region
      %s61 = ssub.s32 1024, 1024
      %62 = vsyncadd [#allocation12], %s61
      %s63 = sshll.u32 [#allocation11], 4
      %s64 = int_to_ptr.vmem [resolvable:$true] %s63
      %69 = dma.hbm_to_vmem [thread:$0]  %s3, 1024, %s64, [#allocation12], 128, 128, 8
    $region17: #{tpu_custom_call.1} parent=1 // pred_fallthru
      _
    // Predicated region
    $region18: #{tpu_custom_call.1} parent=1 // pred_check
      _
    $region19: #{tpu_custom_call.1} parent=1 // pred_check_branch
      %71 = sbr.rel (0) target = $region21
    $region20: #{tpu_custom_call.1} parent=1 // pred_region
      %s73 = ssub.s32 3072, 3072
      %74 = vsyncadd [#allocation12], %s73
      %s75 = sshll.u32 [#allocation13], 4
      %s76 = int_to_ptr.vmem [resolvable:$true] %s75
      %81 = dma.hbm_to_vmem [thread:$0]  %s4, 3072, %s76, [#allocation12], 192, 192, 12
    $region21: #{tpu_custom_call.1} parent=1 // pred_fallthru
      _
    // Predicated region
    $region22: #{tpu_custom_call.1} parent=1 // pred_check
      _
    $region23: #{tpu_custom_call.1} parent=1 // pred_check_branch
      %83 = sbr.rel (0) target = $region25
    $region24: #{tpu_custom_call.1} parent=1 // pred_region
      %s85 = ssub.s32 3072, 3072
      %86 = vsyncadd [#allocation15], %s85
      %s87 = sshll.u32 [#allocation14], 4
      %s88 = int_to_ptr.vmem [resolvable:$true] %s87
      %93 = dma.hbm_to_vmem [thread:$0]  %s5, 3072, %s88, [#allocation15], 192, 192, 12
    $region25: #{tpu_custom_call.1} parent=1 // pred_fallthru
      _
    // Predicated region
    $region26: #{tpu_custom_call.1} parent=1 // pred_check
      _
    $region27: #{tpu_custom_call.1} parent=1 // pred_check_branch
      %95 = sbr.rel (0) target = $region29
    $region28: #{tpu_custom_call.1} parent=1 // pred_region
      _
    $region29: #{tpu_custom_call.1} parent=1 // pred_fallthru
      _
    // Predicated region
    $region30: #{tpu_custom_call.1} parent=1 // pred_check
      _
    $region31: #{tpu_custom_call.1} parent=1 // pred_check_branch
      %97 = sbr.rel (0) target = $region33
    $region32: #{tpu_custom_call.1} parent=1 // pred_region
      %s99 = ssub.s32 1024, 1024
      %100 = vsyncadd [#allocation15], %s99
      %s101 = sshll.u32 [#allocation16], 4
      %s102 = int_to_ptr.vmem [resolvable:$true] %s101
      %107 = dma.hbm_to_vmem [thread:$0]  %s7, 1024, %s102, [#allocation15], 64, 64, 4
    $region33: #{tpu_custom_call.1} parent=1 // pred_fallthru
      _
    // Predicated region
    $region34: #{tpu_custom_call.1} parent=1 // pred_check
      _
    $region35: #{tpu_custom_call.1} parent=1 // pred_check_branch
      %109 = sbr.rel (0) target = $region37
    $region36: #{tpu_custom_call.1} parent=1 // pred_region
      _
    $region37: #{tpu_custom_call.1} parent=1 // pred_fallthru
      _
    // Predicated region
    $region38: #{tpu_custom_call.1} parent=1 // pred_check
      _
    $region39: #{tpu_custom_call.1} parent=1 // pred_check_branch
      %111 = sbr.rel (0) target = $region41
    $region40: #{tpu_custom_call.1} parent=1 // pred_region
      %s113 = ssub.s32 1024, 1024
      %114 = vsyncadd [#allocation18], %s113
      %s115 = sshll.u32 [#allocation17], 4
      %s116 = int_to_ptr.vmem [resolvable:$true] %s115
      %121 = dma.hbm_to_vmem [thread:$0]  %s9, 1024, %s116, [#allocation18], 64, 64, 4
    $region41: #{tpu_custom_call.1} parent=1 // pred_fallthru
      _
    // Predicated region
    $region42: #{tpu_custom_call.1} parent=1 // pred_check
      _
    $region43: #{tpu_custom_call.1} parent=1 // pred_check_branch
      %123 = sbr.rel (0) target = $region45
    $region44: #{tpu_custom_call.1} parent=1 // pred_region
      _
    $region45: #{tpu_custom_call.1} parent=1 // pred_fallthru
      _
    // Predicated region
    $region46: #{tpu_custom_call.1} parent=1 // pred_check
      _
    $region47: #{tpu_custom_call.1} parent=1 // pred_check_branch
      %125 = sbr.rel (0) target = $region49
    $region48: #{tpu_custom_call.1} parent=1 // pred_region
      %126 = dma.done [#allocation6], 512
    $region49: #{tpu_custom_call.1} parent=1 // pred_fallthru
      _
    // Predicated region
    $region50: #{tpu_custom_call.1} parent=1 // pred_check
      _
    $region51: #{tpu_custom_call.1} parent=1 // pred_check_branch
      %128 = sbr.rel (0) target = $region53
    $region52: #{tpu_custom_call.1} parent=1 // pred_region
      %129 = dma.done [#allocation9], 512
    $region53: #{tpu_custom_call.1} parent=1 // pred_fallthru
      _
    // Predicated region
    $region54: #{tpu_custom_call.1} parent=1 // pred_check
      _
    $region55: #{tpu_custom_call.1} parent=1 // pred_check_branch
      %131 = sbr.rel (0) target = $region57
    $region56: #{tpu_custom_call.1} parent=1 // pred_region
      %132 = dma.done [#allocation9], 512
    $region57: #{tpu_custom_call.1} parent=1 // pred_fallthru
      _
    // Predicated region
    $region58: #{tpu_custom_call.1} parent=1 // pred_check
      _
    $region59: #{tpu_custom_call.1} parent=1 // pred_check_branch
      %134 = sbr.rel (0) target = $region61
    $region60: #{tpu_custom_call.1} parent=1 // pred_region
      %135 = dma.done [#allocation12], 1024
    $region61: #{tpu_custom_call.1} parent=1 // pred_fallthru
      _
    // Predicated region
    $region62: #{tpu_custom_call.1} parent=1 // pred_check
      _
    $region63: #{tpu_custom_call.1} parent=1 // pred_check_branch
      %137 = sbr.rel (0) target = $region65
    $region64: #{tpu_custom_call.1} parent=1 // pred_region
      %138 = dma.done [#allocation12], 3072
    $region65: #{tpu_custom_call.1} parent=1 // pred_fallthru
      _
    // Predicated region
    $region66: #{tpu_custom_call.1} parent=1 // pred_check
      _
    $region67: #{tpu_custom_call.1} parent=1 // pred_check_branch
      %140 = sbr.rel (0) target = $region69
    $region68: #{tpu_custom_call.1} parent=1 // pred_region
      %141 = dma.done [#allocation15], 3072
    $region69: #{tpu_custom_call.1} parent=1 // pred_fallthru
      _
    // Predicated region
    $region70: #{tpu_custom_call.1} parent=1 // pred_check
      _
    $region71: #{tpu_custom_call.1} parent=1 // pred_check_branch
      %143 = sbr.rel (0) target = $region73
    $region72: #{tpu_custom_call.1} parent=1 // pred_region
      %144 = dma.done [#allocation15], 1024
    $region73: #{tpu_custom_call.1} parent=1 // pred_fallthru
      _
    // Predicated region
    $region74: #{tpu_custom_call.1} parent=1 // pred_check
      _
    $region75: #{tpu_custom_call.1} parent=1 // pred_check_branch
      %146 = sbr.rel (0) target = $region77
    $region76: #{tpu_custom_call.1} parent=1 // pred_region
      %147 = dma.done [#allocation18], 1024
    $region77: #{tpu_custom_call.1} parent=1 // pred_fallthru
      _
    %v149 = vld [vmem:[#allocation5] sm:$0xf]
    %v150 = vld [vmem:[#allocation5 + $0x4] sm:$0xf]
    %v151 = vld [vmem:[#allocation5 + $0x8] sm:$0xf]
    %v152 = vld [vmem:[#allocation5 + $0xc] sm:$0xf]
    %v153 = vld [vmem:[#allocation5 + $0x10] sm:$0xf]
    %v154 = vld [vmem:[#allocation5 + $0x14] sm:$0xf]
    %v155 = vld [vmem:[#allocation5 + $0x18] sm:$0xf]
    %v156 = vld [vmem:[#allocation5 + $0x1c] sm:$0xf]
    %v157 = vld [vmem:[#allocation13] sm:$0xff]
    %v158 = vld [vmem:[#allocation13 + $0x8] sm:$0xf]
    %v159 = vld [vmem:[#allocation13 + $0xc] sm:$0xff]
    %v160 = vld [vmem:[#allocation13 + $0x14] sm:$0xf]
    %v161 = vld [vmem:[#allocation13 + $0x18] sm:$0xff]
    %v162 = vld [vmem:[#allocation13 + $0x20] sm:$0xf]
    %v163 = vld [vmem:[#allocation13 + $0x24] sm:$0xff]
    %v164 = vld [vmem:[#allocation13 + $0x2c] sm:$0xf]
    %v165 = vld [vmem:[#allocation13 + $0x30] sm:$0xff]
    %v166 = vld [vmem:[#allocation13 + $0x38] sm:$0xf]
    %v167 = vld [vmem:[#allocation13 + $0x3c] sm:$0xff]
    %v168 = vld [vmem:[#allocation13 + $0x44] sm:$0xf]
    %v169 = vld [vmem:[#allocation13 + $0x48] sm:$0xff]
    %v170 = vld [vmem:[#allocation13 + $0x50] sm:$0xf]
    %v171 = vld [vmem:[#allocation13 + $0x54] sm:$0xff]
    %v172 = vld [vmem:[#allocation13 + $0x5c] sm:$0xf]
    %v173 = vld [vmem:[#allocation13 + $0x60] sm:$0xff]
    %v174 = vld [vmem:[#allocation13 + $0x68] sm:$0xf]
    %v175 = vld [vmem:[#allocation13 + $0x6c] sm:$0xff]
    %v176 = vld [vmem:[#allocation13 + $0x74] sm:$0xf]
    %v177 = vld [vmem:[#allocation13 + $0x78] sm:$0xff]
    %v178 = vld [vmem:[#allocation13 + $0x80] sm:$0xf]
    %v179 = vld [vmem:[#allocation13 + $0x84] sm:$0xff]
    %v180 = vld [vmem:[#allocation13 + $0x8c] sm:$0xf]
    %v181 = vld [vmem:[#allocation13 + $0x90] sm:$0xff]
    %v182 = vld [vmem:[#allocation13 + $0x98] sm:$0xf]
    %v183 = vld [vmem:[#allocation13 + $0x9c] sm:$0xff]
    %v184 = vld [vmem:[#allocation13 + $0xa4] sm:$0xf]
    %v185 = vld [vmem:[#allocation13 + $0xa8] sm:$0xff]
    %v186 = vld [vmem:[#allocation13 + $0xb0] sm:$0xf]
    %v187 = vld [vmem:[#allocation13 + $0xb4] sm:$0xff]
    %v188 = vld [vmem:[#allocation13 + $0xbc] sm:$0xf]
    %v197 = vunpack.c.l.b16 %v149
    %v198 = vunpack.c.l.b16 %v150
    %v199 = vunpack.c.l.b16 %v151
    %v200 = vunpack.c.l.b16 %v152
    %v201 = vunpack.c.l.b16 %v153
    %v202 = vunpack.c.l.b16 %v154
    %v203 = vunpack.c.l.b16 %v155
    %v204 = vunpack.c.l.b16 %v156
    %v205 = vpack.c.b16 %v198, %v197
    %v206 = vpack.c.b16 %v200, %v199
    %v207 = vpack.c.b16 %v202, %v201
    %v208 = vpack.c.b16 %v204, %v203
    %v245 = vunpack.c.l.b16 %v157
    %v246 = vunpack.c.h.b16 %v157
    %v247 = vunpack.c.l.b16 %v158
    %v248 = vunpack.c.l.b16 %v159
    %v249 = vunpack.c.h.b16 %v159
    %v250 = vunpack.c.l.b16 %v160
    %v251 = vunpack.c.l.b16 %v161
    %v252 = vunpack.c.h.b16 %v161
    %v253 = vunpack.c.l.b16 %v162
    %v254 = vunpack.c.l.b16 %v163
    %v255 = vunpack.c.h.b16 %v163
    %v256 = vunpack.c.l.b16 %v164
    %v257 = vunpack.c.l.b16 %v165
    %v258 = vunpack.c.h.b16 %v165
    %v259 = vunpack.c.l.b16 %v166
    %v260 = vunpack.c.l.b16 %v167
    %v261 = vunpack.c.h.b16 %v167
    %v262 = vunpack.c.l.b16 %v168
    %v263 = vunpack.c.l.b16 %v169
    %v264 = vunpack.c.h.b16 %v169
    %v265 = vunpack.c.l.b16 %v170
    %v266 = vunpack.c.l.b16 %v171
    %v267 = vunpack.c.h.b16 %v171
    %v268 = vunpack.c.l.b16 %v172
    %v269 = vunpack.c.l.b16 %v173
    %v270 = vunpack.c.h.b16 %v173
    %v271 = vunpack.c.l.b16 %v174
    %v272 = vunpack.c.l.b16 %v175
    %v273 = vunpack.c.h.b16 %v175
    %v274 = vunpack.c.l.b16 %v176
    %v275 = vunpack.c.l.b16 %v177
    %v276 = vunpack.c.h.b16 %v177
    %v277 = vunpack.c.l.b16 %v178
    %v278 = vunpack.c.l.b16 %v179
    %v279 = vunpack.c.h.b16 %v179
    %v280 = vunpack.c.l.b16 %v180
    %v281 = vunpack.c.l.b16 %v181
    %v282 = vunpack.c.h.b16 %v181
    %v283 = vunpack.c.l.b16 %v182
    %v284 = vunpack.c.l.b16 %v183
    %v285 = vunpack.c.h.b16 %v183
    %v286 = vunpack.c.l.b16 %v184
    %v287 = vunpack.c.l.b16 %v185
    %v288 = vunpack.c.h.b16 %v185
    %v289 = vunpack.c.l.b16 %v186
    %v290 = vunpack.c.l.b16 %v187
    %v291 = vunpack.c.h.b16 %v187
    %v292 = vunpack.c.l.b16 %v188
    %v293 = vpack.c.b16 %v248, %v245
    %v294 = vpack.c.b16 %v249, %v246
    %v295 = vpack.c.b16 %v250, %v247
    %v296 = vpack.c.b16 %v254, %v251
    %v297 = vpack.c.b16 %v255, %v252
    %v298 = vpack.c.b16 %v256, %v253
    %v299 = vpack.c.b16 %v260, %v257
    %v300 = vpack.c.b16 %v261, %v258
    %v301 = vpack.c.b16 %v262, %v259
    %v302 = vpack.c.b16 %v266, %v263
    %v303 = vpack.c.b16 %v267, %v264
    %v304 = vpack.c.b16 %v268, %v265
    %v305 = vpack.c.b16 %v272, %v269
    %v306 = vpack.c.b16 %v273, %v270
    %v307 = vpack.c.b16 %v274, %v271
    %v308 = vpack.c.b16 %v278, %v275
    %v309 = vpack.c.b16 %v279, %v276
    %v310 = vpack.c.b16 %v280, %v277
    %v311 = vpack.c.b16 %v284, %v281
    %v312 = vpack.c.b16 %v285, %v282
    %v313 = vpack.c.b16 %v286, %v283
    %v314 = vpack.c.b16 %v290, %v287
    %v315 = vpack.c.b16 %v291, %v288
    %v316 = vpack.c.b16 %v292, %v289
    %341 = vmatprep.subr.bf16.mxu0 %v294
    %342 = vmatpush1.bf16.msra.mxu0 %v293
    %343 = vmatprep.subr.bf16.mxu0 %v297
    %344 = vmatpush1.bf16.msra.mxu0 %v296
    %345 = vmatprep.subr.bf16.mxu0 %v300
    %346 = vmatpush1.bf16.msra.mxu0 %v299
    %347 = vmatprep.subr.bf16.mxu0 %v303
    %348 = vmatpush1.bf16.msra.mxu0 %v302
    %349 = vmatprep.subr.bf16.mxu0 %v306
    %350 = vmatpush1.bf16.msra.mxu0 %v305
    %351 = vmatprep.subr.bf16.mxu0 %v309
    %352 = vmatpush1.bf16.msra.mxu0 %v308
    %353 = vmatprep.subr.bf16.mxu0 %v312
    %354 = vmatpush1.bf16.msra.mxu0 %v311
    %355 = vmatprep.subr.bf16.mxu0 %v315
    %356 = vmatpush1.bf16.msra.mxu0 %v314
    %357 = vmatprep.subr.bf16.mxu0 0
    %358 = vmatpush1.bf16.msra.mxu0 0
    %359 = vmatprep.subr.bf16.mxu0 0
    %360 = vmatpush1.bf16.msra.mxu0 0
    %361 = vmatprep.subr.bf16.mxu0 0
    %362 = vmatpush1.bf16.msra.mxu0 0
    %363 = vmatprep.subr.bf16.mxu0 0
    %364 = vmatpush1.bf16.msra.mxu0 0
    %365 = vmatprep.subr.bf16.mxu0 0
    %366 = vmatpush1.bf16.msra.mxu0 0
    %367 = vmatprep.subr.bf16.mxu0 0
    %368 = vmatpush1.bf16.msra.mxu0 0
    %369 = vmatprep.subr.bf16.mxu0 0
    %370 = vmatpush1.bf16.msra.mxu0 0
    %371 = vmatprep.subr.bf16.mxu0 0
    %372 = vmatpush1.bf16.msra.mxu0 0
    %373 = vmatprep.mubr.bf16.mxu0 0
    %374 = vmatmul.mubr.bf16.gmra.mrb[0].mxu0 %v205
    %v375 = vpop.f32.mrb[0].mxu0
    %v376 = vadd.f32 0.0, %v375
    %v377 = vpop.f32.mrb[0].mxu0
    %v378 = vadd.f32 0.0, %v377
    %v379 = vpop.f32.mrb[0].mxu0
    %v380 = vadd.f32 0.0, %v379
    %v381 = vpop.f32.mrb[0].mxu0
    %v382 = vadd.f32 0.0, %v381
    %383 = vmatprep.mubr.bf16.mxu0 0
    %384 = vmatmul.mubr.bf16.gmra.mrb[0].mxu0 %v206
    %v385 = vpop.f32.mrb[0].mxu0
    %v386 = vadd.f32 0.0, %v385
    %v387 = vpop.f32.mrb[0].mxu0
    %v388 = vadd.f32 0.0, %v387
    %v389 = vpop.f32.mrb[0].mxu0
    %v390 = vadd.f32 0.0, %v389
    %v391 = vpop.f32.mrb[0].mxu0
    %v392 = vadd.f32 0.0, %v391
    %393 = vmatprep.mubr.bf16.mxu0 0
    %394 = vmatmul.mubr.bf16.gmra.mrb[0].mxu0 %v207
    %v395 = vpop.f32.mrb[0].mxu0
    %v396 = vadd.f32 0.0, %v395
    %v397 = vpop.f32.mrb[0].mxu0
    %v398 = vadd.f32 0.0, %v397
    %v399 = vpop.f32.mrb[0].mxu0
    %v400 = vadd.f32 0.0, %v399
    %v401 = vpop.f32.mrb[0].mxu0
    %v402 = vadd.f32 0.0, %v401
    %403 = vmatprep.mubr.bf16.mxu0 0
    %404 = vmatmul.mubr.bf16.gmra.mrb[0].mxu0 %v208
    %v405 = vpop.f32.mrb[0].mxu0
    %v406 = vadd.f32 0.0, %v405
    %v407 = vpop.f32.mrb[0].mxu0
    %v408 = vadd.f32 0.0, %v407
    %v409 = vpop.f32.mrb[0].mxu0
    %v410 = vadd.f32 0.0, %v409
    %v411 = vpop.f32.mrb[0].mxu0
    %v412 = vadd.f32 0.0, %v411
    %413 = vdwg.mxu0
    %414 = vmatprep.subr.bf16.mxu0 0
    %415 = vmatpush1.bf16.msra.mxu0 %v295
    %416 = vmatprep.subr.bf16.mxu0 0
    %417 = vmatpush1.bf16.msra.mxu0 %v298
    %418 = vmatprep.subr.bf16.mxu0 0
    %419 = vmatpush1.bf16.msra.mxu0 %v301
    %420 = vmatprep.subr.bf16.mxu0 0
    %421 = vmatpush1.bf16.msra.mxu0 %v304
    %422 = vmatprep.subr.bf16.mxu0 0
    %423 = vmatpush1.bf16.msra.mxu0 %v307
    %424 = vmatprep.subr.bf16.mxu0 0
    %425 = vmatpush1.bf16.msra.mxu0 %v310
    %426 = vmatprep.subr.bf16.mxu0 0
    %427 = vmatpush1.bf16.msra.mxu0 %v313
    %428 = vmatprep.subr.bf16.mxu0 0
    %429 = vmatpush1.bf16.msra.mxu0 %v316
    %430 = vmatprep.subr.bf16.mxu0 0
    %431 = vmatpush1.bf16.msra.mxu0 0
    %432 = vmatprep.subr.bf16.mxu0 0
    %433 = vmatpush1.bf16.msra.mxu0 0
    %434 = vmatprep.subr.bf16.mxu0 0
    %435 = vmatpush1.bf16.msra.mxu0 0
    %436 = vmatprep.subr.bf16.mxu0 0
    %437 = vmatpush1.bf16.msra.mxu0 0
    %438 = vmatprep.subr.bf16.mxu0 0
    %439 = vmatpush1.bf16.msra.mxu0 0
    %440 = vmatprep.subr.bf16.mxu0 0
    %441 = vmatpush1.bf16.msra.mxu0 0
    %442 = vmatprep.subr.bf16.mxu0 0
    %443 = vmatpush1.bf16.msra.mxu0 0
    %444 = vmatprep.subr.bf16.mxu0 0
    %445 = vmatpush1.bf16.msra.mxu0 0
    %446 = vmatprep.mubr.bf16.mxu0 0
    %447 = vmatmul.mubr.bf16.gmra.mrb[0].mxu0 %v205
    %v448 = vpop.f32.mrb[0].mxu0
    %v449 = vadd.f32 0.0, %v448
    %v450 = vpop.f32.mrb[0].mxu0
    %v451 = vpop.f32.mrb[0].mxu0
    %v452 = vadd.f32 0.0, %v451
    %v453 = vpop.f32.mrb[0].mxu0
    %454 = vmatprep.mubr.bf16.mxu0 0
    %455 = vmatmul.mubr.bf16.gmra.mrb[0].mxu0 %v206
    %v456 = vpop.f32.mrb[0].mxu0
    %v457 = vadd.f32 0.0, %v456
    %v458 = vpop.f32.mrb[0].mxu0
    %v459 = vpop.f32.mrb[0].mxu0
    %v460 = vadd.f32 0.0, %v459
    %v461 = vpop.f32.mrb[0].mxu0
    %462 = vmatprep.mubr.bf16.mxu0 0
    %463 = vmatmul.mubr.bf16.gmra.mrb[0].mxu0 %v207
    %v464 = vpop.f32.mrb[0].mxu0
    %v465 = vadd.f32 0.0, %v464
    %v466 = vpop.f32.mrb[0].mxu0
    %v467 = vpop.f32.mrb[0].mxu0
    %v468 = vadd.f32 0.0, %v467
    %v469 = vpop.f32.mrb[0].mxu0
    %470 = vmatprep.mubr.bf16.mxu0 0
    %471 = vmatmul.mubr.bf16.gmra.mrb[0].mxu0 %v208
    %v472 = vpop.f32.mrb[0].mxu0
    %v473 = vadd.f32 0.0, %v472
    %v474 = vpop.f32.mrb[0].mxu0
    %v475 = vpop.f32.mrb[0].mxu0
    %v476 = vadd.f32 0.0, %v475
    %v477 = vpop.f32.mrb[0].mxu0
    %478 = vdwg.mxu0
    %479 = vst [vmem:[#allocation4] sm:$0xff] %v376
    %480 = vst [vmem:[#allocation4 + $0x8] sm:$0xff] %v378
    %481 = vst [vmem:[#allocation4 + $0x10] sm:$0xff] %v449
    %482 = vst [vmem:[#allocation4 + $0x18] sm:$0xff] %v380
    %483 = vst [vmem:[#allocation4 + $0x20] sm:$0xff] %v382
    %484 = vst [vmem:[#allocation4 + $0x28] sm:$0xff] %v452
    %485 = vst [vmem:[#allocation4 + $0x30] sm:$0xff] %v386
    %486 = vst [vmem:[#allocation4 + $0x38] sm:$0xff] %v388
    %487 = vst [vmem:[#allocation4 + $0x40] sm:$0xff] %v457
    %488 = vst [vmem:[#allocation4 + $0x48] sm:$0xff] %v390
    %489 = vst [vmem:[#allocation4 + $0x50] sm:$0xff] %v392
    %490 = vst [vmem:[#allocation4 + $0x58] sm:$0xff] %v460
    %491 = vst [vmem:[#allocation4 + $0x60] sm:$0xff] %v396
    %492 = vst [vmem:[#allocation4 + $0x68] sm:$0xff] %v398
    %493 = vst [vmem:[#allocation4 + $0x70] sm:$0xff] %v465
    %494 = vst [vmem:[#allocation4 + $0x78] sm:$0xff] %v400
    %495 = vst [vmem:[#allocation4 + $0x80] sm:$0xff] %v402
    %496 = vst [vmem:[#allocation4 + $0x88] sm:$0xff] %v468
    %497 = vst [vmem:[#allocation4 + $0x90] sm:$0xff] %v406
    %498 = vst [vmem:[#allocation4 + $0x98] sm:$0xff] %v408
    %499 = vst [vmem:[#allocation4 + $0xa0] sm:$0xff] %v473
    %500 = vst [vmem:[#allocation4 + $0xa8] sm:$0xff] %v410
    %501 = vst [vmem:[#allocation4 + $0xb0] sm:$0xff] %v412
    %502 = vst [vmem:[#allocation4 + $0xb8] sm:$0xff] %v476
    %v503 = vld [vmem:[#allocation11] sm:$0xff]
    %v504 = vld [vmem:[#allocation11 + $0x8] sm:$0xff]
    %v505 = vld [vmem:[#allocation11 + $0x10] sm:$0xff]
    %v506 = vld [vmem:[#allocation11 + $0x18] sm:$0xff]
    %v507 = vld [vmem:[#allocation11 + $0x20] sm:$0xff]
    %v508 = vld [vmem:[#allocation11 + $0x28] sm:$0xff]
    %v509 = vld [vmem:[#allocation11 + $0x30] sm:$0xff]
    %v510 = vld [vmem:[#allocation11 + $0x38] sm:$0xff]
    %511 = vst [vmem:[#allocation3] sm:$0xff] %v503
    %512 = vst [vmem:[#allocation3 + $0x8] sm:$0xff] %v504
    %513 = vst [vmem:[#allocation3 + $0x10] sm:$0xff] %v505
    %514 = vst [vmem:[#allocation3 + $0x18] sm:$0xff] %v506
    %515 = vst [vmem:[#allocation3 + $0x20] sm:$0xff] %v507
    %516 = vst [vmem:[#allocation3 + $0x28] sm:$0xff] %v508
    %517 = vst [vmem:[#allocation3 + $0x30] sm:$0xff] %v509
    %518 = vst [vmem:[#allocation3 + $0x38] sm:$0xff] %v510
    %v519 = vld [vmem:[#allocation10] sm:$0xf]
    %v520 = vld [vmem:[#allocation10 + $0x4] sm:$0xf]
    %v521 = vld [vmem:[#allocation10 + $0x8] sm:$0xf]
    %v522 = vld [vmem:[#allocation10 + $0xc] sm:$0xf]
    %v523 = vld [vmem:[#allocation10 + $0x10] sm:$0xf]
    %v524 = vld [vmem:[#allocation10 + $0x14] sm:$0xf]
    %v525 = vld [vmem:[#allocation10 + $0x18] sm:$0xf]
    %v526 = vld [vmem:[#allocation10 + $0x1c] sm:$0xf]
    %v535 = vunpack.c.l.b16 %v519
    %v536 = vunpack.c.l.b16 %v520
    %v537 = vunpack.c.l.b16 %v521
    %v538 = vunpack.c.l.b16 %v522
    %v539 = vunpack.c.l.b16 %v523
    %v540 = vunpack.c.l.b16 %v524
    %v541 = vunpack.c.l.b16 %v525
    %v542 = vunpack.c.l.b16 %v526
    %v543 = vpack.c.b16 %v536, %v535
    %v544 = vpack.c.b16 %v538, %v537
    %v545 = vpack.c.b16 %v540, %v539
    %v546 = vpack.c.b16 %v542, %v541
    %551 = vst [vmem:[#allocation2] sm:$0xff] %v543
    %552 = vst [vmem:[#allocation2 + $0x10] sm:$0xff] %v544
    %553 = vst [vmem:[#allocation2 + $0x20] sm:$0xff] %v545
    %554 = vst [vmem:[#allocation2 + $0x30] sm:$0xff] %v546
    %555 = vst [vmem:[#allocation2 + $0x8] sm:$0xff] 0
    %556 = vst [vmem:[#allocation2 + $0x18] sm:$0xff] 0
    %557 = vst [vmem:[#allocation2 + $0x28] sm:$0xff] 0
    %558 = vst [vmem:[#allocation2 + $0x38] sm:$0xff] 0
    %v559 = vld [vmem:[#allocation4] sm:$0xff]
    %v560 = vld [vmem:[#allocation4 + $0x8] sm:$0xff]
    %v561 = vld [vmem:[#allocation4 + $0x10] sm:$0xff]
    %v562 = vld [vmem:[#allocation4 + $0x18] sm:$0xff]
    %v563 = vld [vmem:[#allocation4 + $0x20] sm:$0xff]
    %v564 = vld [vmem:[#allocation4 + $0x28] sm:$0xff]
    %v565 = vld [vmem:[%s6] sm:$0x7]
    %v567 = vlaneseq
    %v568 = vshrl.u32 %v567, 7
    %v569 = vsub.s32 0, %v568
    %v570 = vrot.slane %v565, %v569
    %v571 = vlaneseq
    %v572 = vshrl.u32 %v571, 7
    %v573 = vsub.s32 1, %v572
    %v574 = vrot.slane %v565, %v573
    %v575 = vlaneseq
    %v576 = vshrl.u32 %v575, 7
    %v577 = vsub.s32 2, %v576
    %v578 = vrot.slane %v565, %v577
    %v582 = vadd.f32 %v559, %v570
    %v583 = vadd.f32 %v560, %v574
    %v584 = vadd.f32 %v561, %v578
    %v585 = vadd.f32 %v562, %v570
    %v586 = vadd.f32 %v563, %v574
    %v587 = vadd.f32 %v564, %v578
    %v588 = vxor.u32 %v582, 2147483648
    %v589 = vxor.u32 %v585, 2147483648
    %v590 = vmul.f32 %v588, 1.442695
    %v591 = vpow.pop %v590
    %v592 = vmul.f32 %v589, 1.442695
    %v593 = vpow.pop %v592
    %v594 = vadd.f32 %v591, 1.0
    %v595 = vadd.f32 %v593, 1.0
    %v596 = vrcp.pop %v594
    %v597 = vmul.f32 1.0, %v596
    %v598 = vrcp.pop %v595
    %v599 = vmul.f32 1.0, %v598
    %v600 = vxor.u32 %v583, 2147483648
    %v601 = vxor.u32 %v586, 2147483648
    %v602 = vmul.f32 %v600, 1.442695
    %v603 = vpow.pop %v602
    %v604 = vmul.f32 %v601, 1.442695
    %v605 = vpow.pop %v604
    %v606 = vadd.f32 %v603, 1.0
    %v607 = vadd.f32 %v605, 1.0
    %v608 = vrcp.pop %v606
    %v609 = vmul.f32 1.0, %v608
    %v610 = vrcp.pop %v607
    %v611 = vmul.f32 1.0, %v610
    %v612 = vtanh.pop %v584
    %v613 = vtanh.pop %v587
    %v614 = vmul.f32 %v597, %v612
    %v615 = vmul.f32 %v599, %v613
    %v616 = vld [vmem:[#allocation3] sm:$0xff]
    %v617 = vld [vmem:[#allocation3 + $0x8] sm:$0xff]
    %v618 = vadd.f32 %v614, %v616
    %v619 = vadd.f32 %v615, %v617
    %620 = vst [vmem:[#allocation3] sm:$0xff] %v618
    %621 = vst [vmem:[#allocation3 + $0x8] sm:$0xff] %v619
    %v622 = vtanh.pop %v618
    %v623 = vtanh.pop %v619
    %v624 = vmul.f32 %v609, %v622
    %v625 = vmul.f32 %v611, %v623
    %v626 = vpack.c.bf16 %v625, %v624
    %627 = vst [vmem:[#allocation2] sm:$0xff] %v626
    %v628 = vld [vmem:[#allocation2] sm:$0xff]
    %v629 = vld [vmem:[#allocation16] sm:$0xf]
    %v630 = vld [vmem:[#allocation16 + $0x4] sm:$0xf]
    %v631 = vld [vmem:[#allocation16 + $0x8] sm:$0xf]
    %v632 = vld [vmem:[#allocation16 + $0xc] sm:$0xf]
    %v633 = vld [vmem:[#allocation16 + $0x10] sm:$0xf]
    %v634 = vld [vmem:[#allocation16 + $0x14] sm:$0xf]
    %v635 = vld [vmem:[#allocation16 + $0x18] sm:$0xf]
    %v636 = vld [vmem:[#allocation16 + $0x1c] sm:$0xf]
    %v637 = vld [vmem:[#allocation16 + $0x20] sm:$0xf]
    %v638 = vld [vmem:[#allocation16 + $0x24] sm:$0xf]
    %v639 = vld [vmem:[#allocation16 + $0x28] sm:$0xf]
    %v640 = vld [vmem:[#allocation16 + $0x2c] sm:$0xf]
    %v641 = vld [vmem:[#allocation16 + $0x30] sm:$0xf]
    %v642 = vld [vmem:[#allocation16 + $0x34] sm:$0xf]
    %v643 = vld [vmem:[#allocation16 + $0x38] sm:$0xf]
    %v644 = vld [vmem:[#allocation16 + $0x3c] sm:$0xf]
    %v645 = vld [vmem:[%s8] sm:$0x1]
    %v647 = vlaneseq
    %v648 = vshrl.u32 %v647, 7
    %v649 = vsub.s32 0, %v648
    %v650 = vrot.slane %v645, %v649
    %v668 = vunpack.c.l.b16 %v629
    %v669 = vunpack.c.l.b16 %v630
    %v670 = vunpack.c.l.b16 %v631
    %v671 = vunpack.c.l.b16 %v632
    %v672 = vunpack.c.l.b16 %v633
    %v673 = vunpack.c.l.b16 %v634
    %v674 = vunpack.c.l.b16 %v635
    %v675 = vunpack.c.l.b16 %v636
    %v676 = vunpack.c.l.b16 %v637
    %v677 = vunpack.c.l.b16 %v638
    %v678 = vunpack.c.l.b16 %v639
    %v679 = vunpack.c.l.b16 %v640
    %v680 = vunpack.c.l.b16 %v641
    %v681 = vunpack.c.l.b16 %v642
    %v682 = vunpack.c.l.b16 %v643
    %v683 = vunpack.c.l.b16 %v644
    %v684 = vpack.c.b16 %v669, %v668
    %v685 = vpack.c.b16 %v671, %v670
    %v686 = vpack.c.b16 %v673, %v672
    %v687 = vpack.c.b16 %v675, %v674
    %v688 = vpack.c.b16 %v677, %v676
    %v689 = vpack.c.b16 %v679, %v678
    %v690 = vpack.c.b16 %v681, %v680
    %v691 = vpack.c.b16 %v683, %v682
    %700 = vmatprep.subr.bf16.mxu0 0
    %701 = vmatpush1.bf16.msra.mxu0 %v684
    %702 = vmatprep.subr.bf16.mxu0 0
    %703 = vmatpush1.bf16.msra.mxu0 %v685
    %704 = vmatprep.subr.bf16.mxu0 0
    %705 = vmatpush1.bf16.msra.mxu0 %v686
    %706 = vmatprep.subr.bf16.mxu0 0
    %707 = vmatpush1.bf16.msra.mxu0 %v687
    %708 = vmatprep.subr.bf16.mxu0 0
    %709 = vmatpush1.bf16.msra.mxu0 %v688
    %710 = vmatprep.subr.bf16.mxu0 0
    %711 = vmatpush1.bf16.msra.mxu0 %v689
    %712 = vmatprep.subr.bf16.mxu0 0
    %713 = vmatpush1.bf16.msra.mxu0 %v690
    %714 = vmatprep.subr.bf16.mxu0 0
    %715 = vmatpush1.bf16.msra.mxu0 %v691
    %716 = vmatprep.subr.bf16.mxu0 0
    %717 = vmatpush1.bf16.msra.mxu0 0
    %718 = vmatprep.subr.bf16.mxu0 0
    %719 = vmatpush1.bf16.msra.mxu0 0
    %720 = vmatprep.subr.bf16.mxu0 0
    %721 = vmatpush1.bf16.msra.mxu0 0
    %722 = vmatprep.subr.bf16.mxu0 0
    %723 = vmatpush1.bf16.msra.mxu0 0
    %724 = vmatprep.subr.bf16.mxu0 0
    %725 = vmatpush1.bf16.msra.mxu0 0
    %726 = vmatprep.subr.bf16.mxu0 0
    %727 = vmatpush1.bf16.msra.mxu0 0
    %728 = vmatprep.subr.bf16.mxu0 0
    %729 = vmatpush1.bf16.msra.mxu0 0
    %730 = vmatprep.subr.bf16.mxu0 0
    %731 = vmatpush1.bf16.msra.mxu0 0
    %732 = vmatprep.mubr.bf16.mxu0 0
    %733 = vmatmul.mubr.bf16.gmra.mrb[0].mxu0 %v628
    %v734 = vpop.f32.mrb[0].mxu0
    %v735 = vadd.f32 %v650, %v734
    %v736 = vpop.f32.mrb[0].mxu0
    %v737 = vpop.f32.mrb[0].mxu0
    %v738 = vadd.f32 %v650, %v737
    %v739 = vpop.f32.mrb[0].mxu0
    %740 = vdwg.mxu0
    %v741 = vxor.u32 %v735, 2147483648
    %v742 = vxor.u32 %v738, 2147483648
    %v743 = vmul.f32 %v741, 1.442695
    %v744 = vpow.pop %v743
    %v745 = vmul.f32 %v742, 1.442695
    %v746 = vpow.pop %v745
    %v747 = vadd.f32 %v744, 1.0
    %v748 = vadd.f32 %v746, 1.0
    %v749 = vrcp.pop %v747
    %v750 = vmul.f32 1.0, %v749
    %v751 = vrcp.pop %v748
    %v752 = vmul.f32 1.0, %v751
    %v753 = vld [vmem:[#allocation3] sm:$0xff]
    %v754 = vld [vmem:[#allocation3 + $0x8] sm:$0xff]
    %v755 = vmul.f32 %v750, %v753
    %v756 = vmul.f32 %v752, %v754
    %v757 = vpack.c.bf16 %v756, %v755
    %758 = vst [vmem:[#allocation2 + $0x8] sm:$0xff] %v757
    %v759 = vld [vmem:[#allocation8 + $0x8] sm:$0xf]
    %v760 = vld [vmem:[#allocation8 + $0xc] sm:$0xf]
    %v761 = vld [vmem:[#allocation2] sm:$0xff]
    %v762 = vld [vmem:[#allocation2 + $0x8] sm:$0xff]
    %v763 = vld [vmem:[#allocation2 + $0x10] sm:$0xff]
    %v764 = vld [vmem:[#allocation2 + $0x18] sm:$0xff]
    %v765 = vld [vmem:[#allocation2 + $0x20] sm:$0xff]
    %v766 = vld [vmem:[#allocation2 + $0x28] sm:$0xff]
    %v767 = vld [vmem:[#allocation2 + $0x30] sm:$0xff]
    %v768 = vld [vmem:[#allocation2 + $0x38] sm:$0xff]
    %v771 = vunpack.c.l.b16 %v759
    %v772 = vunpack.c.l.b16 %v760
    %v773 = vpack.c.b16 %v772, %v771
    %vm774 = vcmask 523264
    %v776 = vsel %vm774, %v773, 0
    %778 = vmatprep.subr.bf16.mxu0 %v762
    %779 = vmatpush1.bf16.msra.mxu0 %v761
    %780 = vmatprep.subr.bf16.mxu0 %v764
    %781 = vmatpush1.bf16.msra.mxu0 %v763
    %782 = vmatprep.subr.bf16.mxu0 %v766
    %783 = vmatpush1.bf16.msra.mxu0 %v765
    %784 = vmatprep.subr.bf16.mxu0 %v768
    %785 = vmatpush1.bf16.msra.mxu0 %v767
    %786 = vmatprep.subr.bf16.mxu0 0
    %787 = vmatpush1.bf16.msra.mxu0 0
    %788 = vmatprep.subr.bf16.mxu0 0
    %789 = vmatpush1.bf16.msra.mxu0 0
    %790 = vmatprep.subr.bf16.mxu0 0
    %791 = vmatpush1.bf16.msra.mxu0 0
    %792 = vmatprep.subr.bf16.mxu0 0
    %793 = vmatpush1.bf16.msra.mxu0 0
    %794 = vmatprep.subr.bf16.mxu0 0
    %795 = vmatpush1.bf16.msra.mxu0 0
    %796 = vmatprep.subr.bf16.mxu0 0
    %797 = vmatpush1.bf16.msra.mxu0 0
    %798 = vmatprep.subr.bf16.mxu0 0
    %799 = vmatpush1.bf16.msra.mxu0 0
    %800 = vmatprep.subr.bf16.mxu0 0
    %801 = vmatpush1.bf16.msra.mxu0 0
    %802 = vmatprep.subr.bf16.mxu0 0
    %803 = vmatpush1.bf16.msra.mxu0 0
    %804 = vmatprep.subr.bf16.mxu0 0
    %805 = vmatpush1.bf16.msra.mxu0 0
    %806 = vmatprep.subr.bf16.mxu0 0
    %807 = vmatpush1.bf16.msra.mxu0 0
    %808 = vmatprep.subr.bf16.mxu0 0
    %809 = vmatpush1.bf16.msra.mxu0 0
    %810 = vmatprep.mubr.bf16.mxu0 0
    %811 = vmatmul.mubr.bf16.gmra.mrb[0].mxu0 %v776
    %v812 = vpop.f32.mrb[0].mxu0
    %v813 = vadd.f32 0.0, %v812
    %v814 = vpop.f32.mrb[0].mxu0
    %v815 = vadd.f32 0.0, %v814
    %v816 = vpop.f32.mrb[0].mxu0
    %v817 = vadd.f32 0.0, %v816
    %v818 = vpop.f32.mrb[0].mxu0
    %v819 = vadd.f32 0.0, %v818
    %820 = vdwg.mxu0
    %v821 = vpack.c.bf16 %v817, %v813
    %v822 = vld [vmem:[#allocation14] sm:$0xff]
    %v823 = vld [vmem:[#allocation14 + $0x8] sm:$0xf]
    %v824 = vld [vmem:[#allocation14 + $0xc] sm:$0xff]
    %v825 = vld [vmem:[#allocation14 + $0x14] sm:$0xf]
    %v826 = vld [vmem:[#allocation14 + $0x18] sm:$0xff]
    %v827 = vld [vmem:[#allocation14 + $0x20] sm:$0xf]
    %v828 = vld [vmem:[#allocation14 + $0x24] sm:$0xff]
    %v829 = vld [vmem:[#allocation14 + $0x2c] sm:$0xf]
    %v830 = vld [vmem:[#allocation14 + $0x30] sm:$0xff]
    %v831 = vld [vmem:[#allocation14 + $0x38] sm:$0xf]
    %v832 = vld [vmem:[#allocation14 + $0x3c] sm:$0xff]
    %v833 = vld [vmem:[#allocation14 + $0x44] sm:$0xf]
    %v834 = vld [vmem:[#allocation14 + $0x48] sm:$0xff]
    %v835 = vld [vmem:[#allocation14 + $0x50] sm:$0xf]
    %v836 = vld [vmem:[#allocation14 + $0x54] sm:$0xff]
    %v837 = vld [vmem:[#allocation14 + $0x5c] sm:$0xf]
    %v838 = vld [vmem:[#allocation14 + $0x60] sm:$0xff]
    %v839 = vld [vmem:[#allocation14 + $0x68] sm:$0xf]
    %v840 = vld [vmem:[#allocation14 + $0x6c] sm:$0xff]
    %v841 = vld [vmem:[#allocation14 + $0x74] sm:$0xf]
    %v842 = vld [vmem:[#allocation14 + $0x78] sm:$0xff]
    %v843 = vld [vmem:[#allocation14 + $0x80] sm:$0xf]
    %v844 = vld [vmem:[#allocation14 + $0x84] sm:$0xff]
    %v845 = vld [vmem:[#allocation14 + $0x8c] sm:$0xf]
    %v846 = vld [vmem:[#allocation14 + $0x90] sm:$0xff]
    %v847 = vld [vmem:[#allocation14 + $0x98] sm:$0xf]
    %v848 = vld [vmem:[#allocation14 + $0x9c] sm:$0xff]
    %v849 = vld [vmem:[#allocation14 + $0xa4] sm:$0xf]
    %v850 = vld [vmem:[#allocation14 + $0xa8] sm:$0xff]
    %v851 = vld [vmem:[#allocation14 + $0xb0] sm:$0xf]
    %v852 = vld [vmem:[#allocation14 + $0xb4] sm:$0xff]
    %v853 = vld [vmem:[#allocation14 + $0xbc] sm:$0xf]
    %v886 = vunpack.c.l.b16 %v822
    %v887 = vunpack.c.h.b16 %v822
    %v888 = vunpack.c.l.b16 %v823
    %v889 = vunpack.c.l.b16 %v824
    %v890 = vunpack.c.h.b16 %v824
    %v891 = vunpack.c.l.b16 %v825
    %v892 = vunpack.c.l.b16 %v826
    %v893 = vunpack.c.h.b16 %v826
    %v894 = vunpack.c.l.b16 %v827
    %v895 = vunpack.c.l.b16 %v828
    %v896 = vunpack.c.h.b16 %v828
    %v897 = vunpack.c.l.b16 %v829
    %v898 = vunpack.c.l.b16 %v830
    %v899 = vunpack.c.h.b16 %v830
    %v900 = vunpack.c.l.b16 %v831
    %v901 = vunpack.c.l.b16 %v832
    %v902 = vunpack.c.h.b16 %v832
    %v903 = vunpack.c.l.b16 %v833
    %v904 = vunpack.c.l.b16 %v834
    %v905 = vunpack.c.h.b16 %v834
    %v906 = vunpack.c.l.b16 %v835
    %v907 = vunpack.c.l.b16 %v836
    %v908 = vunpack.c.h.b16 %v836
    %v909 = vunpack.c.l.b16 %v837
    %v910 = vunpack.c.l.b16 %v838
    %v911 = vunpack.c.h.b16 %v838
    %v912 = vunpack.c.l.b16 %v839
    %v913 = vunpack.c.l.b16 %v840
    %v914 = vunpack.c.h.b16 %v840
    %v915 = vunpack.c.l.b16 %v841
    %v916 = vunpack.c.l.b16 %v842
    %v917 = vunpack.c.h.b16 %v842
    %v918 = vunpack.c.l.b16 %v843
    %v919 = vunpack.c.l.b16 %v844
    %v920 = vunpack.c.h.b16 %v844
    %v921 = vunpack.c.l.b16 %v845
    %v922 = vunpack.c.l.b16 %v846
    %v923 = vunpack.c.h.b16 %v846
    %v924 = vunpack.c.l.b16 %v847
    %v925 = vunpack.c.l.b16 %v848
    %v926 = vunpack.c.h.b16 %v848
    %v927 = vunpack.c.l.b16 %v849
    %v928 = vunpack.c.l.b16 %v850
    %v929 = vunpack.c.h.b16 %v850
    %v930 = vunpack.c.l.b16 %v851
    %v931 = vunpack.c.l.b16 %v852
    %v932 = vunpack.c.h.b16 %v852
    %v933 = vunpack.c.l.b16 %v853
    %v934 = vpack.c.b16 %v889, %v886
    %v935 = vpack.c.b16 %v890, %v887
    %v936 = vpack.c.b16 %v891, %v888
    %v937 = vpack.c.b16 %v895, %v892
    %v938 = vpack.c.b16 %v896, %v893
    %v939 = vpack.c.b16 %v897, %v894
    %v940 = vpack.c.b16 %v901, %v898
    %v941 = vpack.c.b16 %v902, %v899
    %v942 = vpack.c.b16 %v903, %v900
    %v943 = vpack.c.b16 %v907, %v904
    %v944 = vpack.c.b16 %v908, %v905
    %v945 = vpack.c.b16 %v909, %v906
    %v946 = vpack.c.b16 %v913, %v910
    %v947 = vpack.c.b16 %v914, %v911
    %v948 = vpack.c.b16 %v915, %v912
    %v949 = vpack.c.b16 %v919, %v916
    %v950 = vpack.c.b16 %v920, %v917
    %v951 = vpack.c.b16 %v921, %v918
    %v952 = vpack.c.b16 %v925, %v922
    %v953 = vpack.c.b16 %v926, %v923
    %v954 = vpack.c.b16 %v927, %v924
    %v955 = vpack.c.b16 %v931, %v928
    %v956 = vpack.c.b16 %v932, %v929
    %v957 = vpack.c.b16 %v933, %v930
    %982 = vmatprep.subr.bf16.mxu0 %v935
    %983 = vmatpush1.bf16.msra.mxu0 %v934
    %984 = vmatprep.subr.bf16.mxu0 %v938
    %985 = vmatpush1.bf16.msra.mxu0 %v937
    %986 = vmatprep.subr.bf16.mxu0 %v941
    %987 = vmatpush1.bf16.msra.mxu0 %v940
    %988 = vmatprep.subr.bf16.mxu0 %v944
    %989 = vmatpush1.bf16.msra.mxu0 %v943
    %990 = vmatprep.subr.bf16.mxu0 %v947
    %991 = vmatpush1.bf16.msra.mxu0 %v946
    %992 = vmatprep.subr.bf16.mxu0 %v950
    %993 = vmatpush1.bf16.msra.mxu0 %v949
    %994 = vmatprep.subr.bf16.mxu0 %v953
    %995 = vmatpush1.bf16.msra.mxu0 %v952
    %996 = vmatprep.subr.bf16.mxu0 %v956
    %997 = vmatpush1.bf16.msra.mxu0 %v955
    %998 = vmatprep.subr.bf16.mxu0 0
    %999 = vmatpush1.bf16.msra.mxu0 0
    %1000 = vmatprep.subr.bf16.mxu0 0
    %1001 = vmatpush1.bf16.msra.mxu0 0
    %1002 = vmatprep.subr.bf16.mxu0 0
    %1003 = vmatpush1.bf16.msra.mxu0 0
    %1004 = vmatprep.subr.bf16.mxu0 0
    %1005 = vmatpush1.bf16.msra.mxu0 0
    %1006 = vmatprep.subr.bf16.mxu0 0
    %1007 = vmatpush1.bf16.msra.mxu0 0
    %1008 = vmatprep.subr.bf16.mxu0 0
    %1009 = vmatpush1.bf16.msra.mxu0 0
    %1010 = vmatprep.subr.bf16.mxu0 0
    %1011 = vmatpush1.bf16.msra.mxu0 0
    %1012 = vmatprep.subr.bf16.mxu0 0
    %1013 = vmatpush1.bf16.msra.mxu0 0
    %1014 = vmatprep.mubr.bf16.mxu0 0
    %1015 = vmatmul.mubr.bf16.gmra.mrb[0].mxu0 %v821
    %v1016 = vpop.f32.mrb[0].mxu0
    %v1017 = vadd.f32 0.0, %v1016
    %v1018 = vpop.f32.mrb[0].mxu0
    %v1019 = vadd.f32 0.0, %v1018
    %v1020 = vpop.f32.mrb[0].mxu0
    %v1021 = vadd.f32 0.0, %v1020
    %v1022 = vpop.f32.mrb[0].mxu0
    %v1023 = vadd.f32 0.0, %v1022
    %1024 = vdwg.mxu0
    %1025 = vmatprep.subr.bf16.mxu0 0
    %1026 = vmatpush1.bf16.msra.mxu0 %v936
    %1027 = vmatprep.subr.bf16.mxu0 0
    %1028 = vmatpush1.bf16.msra.mxu0 %v939
    %1029 = vmatprep.subr.bf16.mxu0 0
    %1030 = vmatpush1.bf16.msra.mxu0 %v942
    %1031 = vmatprep.subr.bf16.mxu0 0
    %1032 = vmatpush1.bf16.msra.mxu0 %v945
    %1033 = vmatprep.subr.bf16.mxu0 0
    %1034 = vmatpush1.bf16.msra.mxu0 %v948
    %1035 = vmatprep.subr.bf16.mxu0 0
    %1036 = vmatpush1.bf16.msra.mxu0 %v951
    %1037 = vmatprep.subr.bf16.mxu0 0
    %1038 = vmatpush1.bf16.msra.mxu0 %v954
    %1039 = vmatprep.subr.bf16.mxu0 0
    %1040 = vmatpush1.bf16.msra.mxu0 %v957
    %1041 = vmatprep.subr.bf16.mxu0 0
    %1042 = vmatpush1.bf16.msra.mxu0 0
    %1043 = vmatprep.subr.bf16.mxu0 0
    %1044 = vmatpush1.bf16.msra.mxu0 0
    %1045 = vmatprep.subr.bf16.mxu0 0
    %1046 = vmatpush1.bf16.msra.mxu0 0
    %1047 = vmatprep.subr.bf16.mxu0 0
    %1048 = vmatpush1.bf16.msra.mxu0 0
    %1049 = vmatprep.subr.bf16.mxu0 0
    %1050 = vmatpush1.bf16.msra.mxu0 0
    %1051 = vmatprep.subr.bf16.mxu0 0
    %1052 = vmatpush1.bf16.msra.mxu0 0
    %1053 = vmatprep.subr.bf16.mxu0 0
    %1054 = vmatpush1.bf16.msra.mxu0 0
    %1055 = vmatprep.subr.bf16.mxu0 0
    %1056 = vmatpush1.bf16.msra.mxu0 0
    %1057 = vmatprep.mubr.bf16.mxu0 0
    %1058 = vmatmul.mubr.bf16.gmra.mrb[0].mxu0 %v821
    %v1059 = vpop.f32.mrb[0].mxu0
    %v1060 = vadd.f32 0.0, %v1059
    %v1061 = vpop.f32.mrb[0].mxu0
    %v1062 = vpop.f32.mrb[0].mxu0
    %v1063 = vadd.f32 0.0, %v1062
    %v1064 = vpop.f32.mrb[0].mxu0
    %1065 = vdwg.mxu0
    %1066 = vst [vmem:[#allocation4 + $0x30] sm:$0xff] %v1017
    %1067 = vst [vmem:[#allocation4 + $0x38] sm:$0xff] %v1019
    %1068 = vst [vmem:[#allocation4 + $0x40] sm:$0xff] %v1060
    %1069 = vst [vmem:[#allocation4 + $0x48] sm:$0xff] %v1021
    %1070 = vst [vmem:[#allocation4 + $0x50] sm:$0xff] %v1023
    %1071 = vst [vmem:[#allocation4 + $0x58] sm:$0xff] %v1063
    %1072 = vst [vmem:[#allocation3 + $0x10] sm:$0xff] %v815
    %1073 = vst [vmem:[#allocation3 + $0x18] sm:$0xff] %v819
    %v1074 = vld [vmem:[#allocation4 + $0x30] sm:$0xff]
    %v1075 = vld [vmem:[#allocation4 + $0x38] sm:$0xff]
    %v1076 = vld [vmem:[#allocation4 + $0x40] sm:$0xff]
    %v1077 = vld [vmem:[#allocation4 + $0x48] sm:$0xff]
    %v1078 = vld [vmem:[#allocation4 + $0x50] sm:$0xff]
    %v1079 = vld [vmem:[#allocation4 + $0x58] sm:$0xff]
    %v1080 = vld [vmem:[%s6] sm:$0x7]
    %v1082 = vlaneseq
    %v1083 = vshrl.u32 %v1082, 7
    %v1084 = vsub.s32 0, %v1083
    %v1085 = vrot.slane %v1080, %v1084
    %v1086 = vlaneseq
    %v1087 = vshrl.u32 %v1086, 7
    %v1088 = vsub.s32 1, %v1087
    %v1089 = vrot.slane %v1080, %v1088
    %v1090 = vlaneseq
    %v1091 = vshrl.u32 %v1090, 7
    %v1092 = vsub.s32 2, %v1091
    %v1093 = vrot.slane %v1080, %v1092
    %v1097 = vadd.f32 %v1074, %v1085
    %v1098 = vadd.f32 %v1075, %v1089
    %v1099 = vadd.f32 %v1076, %v1093
    %v1100 = vadd.f32 %v1077, %v1085
    %v1101 = vadd.f32 %v1078, %v1089
    %v1102 = vadd.f32 %v1079, %v1093
    %v1103 = vxor.u32 %v1097, 2147483648
    %v1104 = vxor.u32 %v1100, 2147483648
    %v1105 = vmul.f32 %v1103, 1.442695
    %v1106 = vpow.pop %v1105
    %v1107 = vmul.f32 %v1104, 1.442695
    %v1108 = vpow.pop %v1107
    %v1109 = vadd.f32 %v1106, 1.0
    %v1110 = vadd.f32 %v1108, 1.0
    %v1111 = vrcp.pop %v1109
    %v1112 = vmul.f32 1.0, %v1111
    %v1113 = vrcp.pop %v1110
    %v1114 = vmul.f32 1.0, %v1113
    %v1115 = vxor.u32 %v1098, 2147483648
    %v1116 = vxor.u32 %v1101, 2147483648
    %v1117 = vmul.f32 %v1115, 1.442695
    %v1118 = vpow.pop %v1117
    %v1119 = vmul.f32 %v1116, 1.442695
    %v1120 = vpow.pop %v1119
    %v1121 = vadd.f32 %v1118, 1.0
    %v1122 = vadd.f32 %v1120, 1.0
    %v1123 = vrcp.pop %v1121
    %v1124 = vmul.f32 1.0, %v1123
    %v1125 = vrcp.pop %v1122
    %v1126 = vmul.f32 1.0, %v1125
    %v1127 = vtanh.pop %v1099
    %v1128 = vtanh.pop %v1102
    %v1129 = vmul.f32 %v1112, %v1127
    %v1130 = vmul.f32 %v1114, %v1128
    %v1131 = vld [vmem:[#allocation3 + $0x10] sm:$0xff]
    %v1132 = vld [vmem:[#allocation3 + $0x18] sm:$0xff]
    %v1133 = vadd.f32 %v1129, %v1131
    %v1134 = vadd.f32 %v1130, %v1132
    %1135 = vst [vmem:[#allocation3 + $0x10] sm:$0xff] %v1133
    %1136 = vst [vmem:[#allocation3 + $0x18] sm:$0xff] %v1134
    %v1137 = vtanh.pop %v1133
    %v1138 = vtanh.pop %v1134
    %v1139 = vmul.f32 %v1124, %v1137
    %v1140 = vmul.f32 %v1126, %v1138
    %v1141 = vpack.c.bf16 %v1140, %v1139
    %1142 = vst [vmem:[#allocation2 + $0x10] sm:$0xff] %v1141
    %v1143 = vld [vmem:[#allocation2] sm:$0xff]
    %v1144 = vld [vmem:[#allocation2 + $0x10] sm:$0xff]
    %v1145 = vld [vmem:[#allocation16] sm:$0xf]
    %v1146 = vld [vmem:[#allocation16 + $0x4] sm:$0xf]
    %v1147 = vld [vmem:[#allocation16 + $0x8] sm:$0xf]
    %v1148 = vld [vmem:[#allocation16 + $0xc] sm:$0xf]
    %v1149 = vld [vmem:[#allocation16 + $0x10] sm:$0xf]
    %v1150 = vld [vmem:[#allocation16 + $0x14] sm:$0xf]
    %v1151 = vld [vmem:[#allocation16 + $0x18] sm:$0xf]
    %v1152 = vld [vmem:[#allocation16 + $0x1c] sm:$0xf]
    %v1153 = vld [vmem:[#allocation16 + $0x20] sm:$0xf]
    %v1154 = vld [vmem:[#allocation16 + $0x24] sm:$0xf]
    %v1155 = vld [vmem:[#allocation16 + $0x28] sm:$0xf]
    %v1156 = vld [vmem:[#allocation16 + $0x2c] sm:$0xf]
    %v1157 = vld [vmem:[#allocation16 + $0x30] sm:$0xf]
    %v1158 = vld [vmem:[#allocation16 + $0x34] sm:$0xf]
    %v1159 = vld [vmem:[#allocation16 + $0x38] sm:$0xf]
    %v1160 = vld [vmem:[#allocation16 + $0x3c] sm:$0xf]
    %v1161 = vld [vmem:[%s8] sm:$0x1]
    %v1163 = vlaneseq
    %v1164 = vshrl.u32 %v1163, 7
    %v1165 = vsub.s32 0, %v1164
    %v1166 = vrot.slane %v1161, %v1165
    %v1184 = vunpack.c.l.b16 %v1145
    %v1185 = vunpack.c.l.b16 %v1146
    %v1186 = vunpack.c.l.b16 %v1147
    %v1187 = vunpack.c.l.b16 %v1148
    %v1188 = vunpack.c.l.b16 %v1149
    %v1189 = vunpack.c.l.b16 %v1150
    %v1190 = vunpack.c.l.b16 %v1151
    %v1191 = vunpack.c.l.b16 %v1152
    %v1192 = vunpack.c.l.b16 %v1153
    %v1193 = vunpack.c.l.b16 %v1154
    %v1194 = vunpack.c.l.b16 %v1155
    %v1195 = vunpack.c.l.b16 %v1156
    %v1196 = vunpack.c.l.b16 %v1157
    %v1197 = vunpack.c.l.b16 %v1158
    %v1198 = vunpack.c.l.b16 %v1159
    %v1199 = vunpack.c.l.b16 %v1160
    %v1200 = vpack.c.b16 %v1185, %v1184
    %v1201 = vpack.c.b16 %v1187, %v1186
    %v1202 = vpack.c.b16 %v1189, %v1188
    %v1203 = vpack.c.b16 %v1191, %v1190
    %v1204 = vpack.c.b16 %v1193, %v1192
    %v1205 = vpack.c.b16 %v1195, %v1194
    %v1206 = vpack.c.b16 %v1197, %v1196
    %v1207 = vpack.c.b16 %v1199, %v1198
    %1216 = vmatprep.subr.bf16.mxu0 0
    %1217 = vmatpush1.bf16.msra.mxu0 %v1200
    %1218 = vmatprep.subr.bf16.mxu0 0
    %1219 = vmatpush1.bf16.msra.mxu0 %v1201
    %1220 = vmatprep.subr.bf16.mxu0 0
    %1221 = vmatpush1.bf16.msra.mxu0 %v1202
    %1222 = vmatprep.subr.bf16.mxu0 0
    %1223 = vmatpush1.bf16.msra.mxu0 %v1203
    %1224 = vmatprep.subr.bf16.mxu0 0
    %1225 = vmatpush1.bf16.msra.mxu0 %v1204
    %1226 = vmatprep.subr.bf16.mxu0 0
    %1227 = vmatpush1.bf16.msra.mxu0 %v1205
    %1228 = vmatprep.subr.bf16.mxu0 0
    %1229 = vmatpush1.bf16.msra.mxu0 %v1206
    %1230 = vmatprep.subr.bf16.mxu0 0
    %1231 = vmatpush1.bf16.msra.mxu0 %v1207
    %1232 = vmatprep.subr.bf16.mxu0 0
    %1233 = vmatpush1.bf16.msra.mxu0 0
    %1234 = vmatprep.subr.bf16.mxu0 0
    %1235 = vmatpush1.bf16.msra.mxu0 0
    %1236 = vmatprep.subr.bf16.mxu0 0
    %1237 = vmatpush1.bf16.msra.mxu0 0
    %1238 = vmatprep.subr.bf16.mxu0 0
    %1239 = vmatpush1.bf16.msra.mxu0 0
    %1240 = vmatprep.subr.bf16.mxu0 0
    %1241 = vmatpush1.bf16.msra.mxu0 0
    %1242 = vmatprep.subr.bf16.mxu0 0
    %1243 = vmatpush1.bf16.msra.mxu0 0
    %1244 = vmatprep.subr.bf16.mxu0 0
    %1245 = vmatpush1.bf16.msra.mxu0 0
    %1246 = vmatprep.subr.bf16.mxu0 0
    %1247 = vmatpush1.bf16.msra.mxu0 0
    %1248 = vmatprep.mubr.bf16.mxu0 0
    %1249 = vmatmul.mubr.bf16.gmra.mrb[0].mxu0 %v1143
    %v1250 = vpop.f32.mrb[0].mxu0
    %v1251 = vadd.f32 %v1166, %v1250
    %v1252 = vpop.f32.mrb[0].mxu0
    %v1253 = vpop.f32.mrb[0].mxu0
    %v1254 = vadd.f32 %v1166, %v1253
    %v1255 = vpop.f32.mrb[0].mxu0
    %1256 = vmatprep.mubr.bf16.mxu0 0
    %1257 = vmatmul.mubr.bf16.gmra.mrb[0].mxu0 %v1144
    %v1258 = vpop.f32.mrb[0].mxu0
    %v1259 = vadd.f32 %v1166, %v1258
    %v1260 = vpop.f32.mrb[0].mxu0
    %v1261 = vpop.f32.mrb[0].mxu0
    %v1262 = vadd.f32 %v1166, %v1261
    %v1263 = vpop.f32.mrb[0].mxu0
    %1264 = vdwg.mxu0
    %v1265 = vxor.u32 %v1251, 2147483648
    %v1266 = vxor.u32 %v1254, 2147483648
    %v1267 = vxor.u32 %v1259, 2147483648
    %v1268 = vxor.u32 %v1262, 2147483648
    %v1269 = vmul.f32 %v1265, 1.442695
    %v1270 = vpow.pop %v1269
    %v1271 = vmul.f32 %v1266, 1.442695
    %v1272 = vpow.pop %v1271
    %v1273 = vmul.f32 %v1267, 1.442695
    %v1274 = vpow.pop %v1273
    %v1275 = vmul.f32 %v1268, 1.442695
    %v1276 = vpow.pop %v1275
    %v1277 = vadd.f32 %v1270, 1.0
    %v1278 = vadd.f32 %v1272, 1.0
    %v1279 = vadd.f32 %v1274, 1.0
    %v1280 = vadd.f32 %v1276, 1.0
    %v1281 = vrcp.pop %v1277
    %v1282 = vmul.f32 1.0, %v1281
    %v1283 = vrcp.pop %v1278
    %v1284 = vmul.f32 1.0, %v1283
    %v1285 = vrcp.pop %v1279
    %v1286 = vmul.f32 1.0, %v1285
    %v1287 = vrcp.pop %v1280
    %v1288 = vmul.f32 1.0, %v1287
    %v1289 = vld [vmem:[#allocation3] sm:$0xff]
    %v1290 = vld [vmem:[#allocation3 + $0x8] sm:$0xff]
    %v1291 = vld [vmem:[#allocation3 + $0x10] sm:$0xff]
    %v1292 = vld [vmem:[#allocation3 + $0x18] sm:$0xff]
    %v1293 = vmul.f32 %v1282, %v1289
    %v1294 = vmul.f32 %v1284, %v1290
    %v1295 = vmul.f32 %v1286, %v1291
    %v1296 = vmul.f32 %v1288, %v1292
    %v1297 = vpack.c.bf16 %v1294, %v1293
    %v1298 = vpack.c.bf16 %v1296, %v1295
    %1299 = vst [vmem:[#allocation2 + $0x8] sm:$0xff] %v1297
    %1300 = vst [vmem:[#allocation2 + $0x18] sm:$0xff] %v1298
    %v1301 = vld [vmem:[#allocation8 + $0x10] sm:$0xf]
    %v1302 = vld [vmem:[#allocation8 + $0x14] sm:$0xf]
    %v1303 = vld [vmem:[#allocation2] sm:$0xff]
    %v1304 = vld [vmem:[#allocation2 + $0x8] sm:$0xff]
    %v1305 = vld [vmem:[#allocation2 + $0x10] sm:$0xff]
    %v1306 = vld [vmem:[#allocation2 + $0x18] sm:$0xff]
    %v1307 = vld [vmem:[#allocation2 + $0x20] sm:$0xff]
    %v1308 = vld [vmem:[#allocation2 + $0x28] sm:$0xff]
    %v1309 = vld [vmem:[#allocation2 + $0x30] sm:$0xff]
    %v1310 = vld [vmem:[#allocation2 + $0x38] sm:$0xff]
    %v1313 = vunpack.c.l.b16 %v1301
    %v1314 = vunpack.c.l.b16 %v1302
    %v1315 = vpack.c.b16 %v1314, %v1313
    %v1317 = vsel %vm774, %v1315, 0
    %1319 = vmatprep.subr.bf16.mxu0 %v1304
    %1320 = vmatpush1.bf16.msra.mxu0 %v1303
    %1321 = vmatprep.subr.bf16.mxu0 %v1306
    %1322 = vmatpush1.bf16.msra.mxu0 %v1305
    %1323 = vmatprep.subr.bf16.mxu0 %v1308
    %1324 = vmatpush1.bf16.msra.mxu0 %v1307
    %1325 = vmatprep.subr.bf16.mxu0 %v1310
    %1326 = vmatpush1.bf16.msra.mxu0 %v1309
    %1327 = vmatprep.subr.bf16.mxu0 0
    %1328 = vmatpush1.bf16.msra.mxu0 0
    %1329 = vmatprep.subr.bf16.mxu0 0
    %1330 = vmatpush1.bf16.msra.mxu0 0
    %1331 = vmatprep.subr.bf16.mxu0 0
    %1332 = vmatpush1.bf16.msra.mxu0 0
    %1333 = vmatprep.subr.bf16.mxu0 0
    %1334 = vmatpush1.bf16.msra.mxu0 0
    %1335 = vmatprep.subr.bf16.mxu0 0
    %1336 = vmatpush1.bf16.msra.mxu0 0
    %1337 = vmatprep.subr.bf16.mxu0 0
    %1338 = vmatpush1.bf16.msra.mxu0 0
    %1339 = vmatprep.subr.bf16.mxu0 0
    %1340 = vmatpush1.bf16.msra.mxu0 0
    %1341 = vmatprep.subr.bf16.mxu0 0
    %1342 = vmatpush1.bf16.msra.mxu0 0
    %1343 = vmatprep.subr.bf16.mxu0 0
    %1344 = vmatpush1.bf16.msra.mxu0 0
    %1345 = vmatprep.subr.bf16.mxu0 0
    %1346 = vmatpush1.bf16.msra.mxu0 0
    %1347 = vmatprep.subr.bf16.mxu0 0
    %1348 = vmatpush1.bf16.msra.mxu0 0
    %1349 = vmatprep.subr.bf16.mxu0 0
    %1350 = vmatpush1.bf16.msra.mxu0 0
    %1351 = vmatprep.mubr.bf16.mxu0 0
    %1352 = vmatmul.mubr.bf16.gmra.mrb[0].mxu0 %v1317
    %v1353 = vpop.f32.mrb[0].mxu0
    %v1354 = vadd.f32 0.0, %v1353
    %v1355 = vpop.f32.mrb[0].mxu0
    %v1356 = vadd.f32 0.0, %v1355
    %v1357 = vpop.f32.mrb[0].mxu0
    %v1358 = vadd.f32 0.0, %v1357
    %v1359 = vpop.f32.mrb[0].mxu0
    %v1360 = vadd.f32 0.0, %v1359
    %1361 = vdwg.mxu0
    %v1362 = vpack.c.bf16 %v1358, %v1354
    %v1363 = vld [vmem:[#allocation14] sm:$0xff]
    %v1364 = vld [vmem:[#allocation14 + $0x8] sm:$0xf]
    %v1365 = vld [vmem:[#allocation14 + $0xc] sm:$0xff]
    %v1366 = vld [vmem:[#allocation14 + $0x14] sm:$0xf]
    %v1367 = vld [vmem:[#allocation14 + $0x18] sm:$0xff]
    %v1368 = vld [vmem:[#allocation14 + $0x20] sm:$0xf]
    %v1369 = vld [vmem:[#allocation14 + $0x24] sm:$0xff]
    %v1370 = vld [vmem:[#allocation14 + $0x2c] sm:$0xf]
    %v1371 = vld [vmem:[#allocation14 + $0x30] sm:$0xff]
    %v1372 = vld [vmem:[#allocation14 + $0x38] sm:$0xf]
    %v1373 = vld [vmem:[#allocation14 + $0x3c] sm:$0xff]
    %v1374 = vld [vmem:[#allocation14 + $0x44] sm:$0xf]
    %v1375 = vld [vmem:[#allocation14 + $0x48] sm:$0xff]
    %v1376 = vld [vmem:[#allocation14 + $0x50] sm:$0xf]
    %v1377 = vld [vmem:[#allocation14 + $0x54] sm:$0xff]
    %v1378 = vld [vmem:[#allocation14 + $0x5c] sm:$0xf]
    %v1379 = vld [vmem:[#allocation14 + $0x60] sm:$0xff]
    %v1380 = vld [vmem:[#allocation14 + $0x68] sm:$0xf]
    %v1381 = vld [vmem:[#allocation14 + $0x6c] sm:$0xff]
    %v1382 = vld [vmem:[#allocation14 + $0x74] sm:$0xf]
    %v1383 = vld [vmem:[#allocation14 + $0x78] sm:$0xff]
    %v1384 = vld [vmem:[#allocation14 + $0x80] sm:$0xf]
    %v1385 = vld [vmem:[#allocation14 + $0x84] sm:$0xff]
    %v1386 = vld [vmem:[#allocation14 + $0x8c] sm:$0xf]
    %v1387 = vld [vmem:[#allocation14 + $0x90] sm:$0xff]
    %v1388 = vld [vmem:[#allocation14 + $0x98] sm:$0xf]
    %v1389 = vld [vmem:[#allocation14 + $0x9c] sm:$0xff]
    %v1390 = vld [vmem:[#allocation14 + $0xa4] sm:$0xf]
    %v1391 = vld [vmem:[#allocation14 + $0xa8] sm:$0xff]
    %v1392 = vld [vmem:[#allocation14 + $0xb0] sm:$0xf]
    %v1393 = vld [vmem:[#allocation14 + $0xb4] sm:$0xff]
    %v1394 = vld [vmem:[#allocation14 + $0xbc] sm:$0xf]
    %v1427 = vunpack.c.l.b16 %v1363
    %v1428 = vunpack.c.h.b16 %v1363
    %v1429 = vunpack.c.l.b16 %v1364
    %v1430 = vunpack.c.l.b16 %v1365
    %v1431 = vunpack.c.h.b16 %v1365
    %v1432 = vunpack.c.l.b16 %v1366
    %v1433 = vunpack.c.l.b16 %v1367
    %v1434 = vunpack.c.h.b16 %v1367
    %v1435 = vunpack.c.l.b16 %v1368
    %v1436 = vunpack.c.l.b16 %v1369
    %v1437 = vunpack.c.h.b16 %v1369
    %v1438 = vunpack.c.l.b16 %v1370
    %v1439 = vunpack.c.l.b16 %v1371
    %v1440 = vunpack.c.h.b16 %v1371
    %v1441 = vunpack.c.l.b16 %v1372
    %v1442 = vunpack.c.l.b16 %v1373
    %v1443 = vunpack.c.h.b16 %v1373
    %v1444 = vunpack.c.l.b16 %v1374
    %v1445 = vunpack.c.l.b16 %v1375
    %v1446 = vunpack.c.h.b16 %v1375
    %v1447 = vunpack.c.l.b16 %v1376
    %v1448 = vunpack.c.l.b16 %v1377
    %v1449 = vunpack.c.h.b16 %v1377
    %v1450 = vunpack.c.l.b16 %v1378
    %v1451 = vunpack.c.l.b16 %v1379
    %v1452 = vunpack.c.h.b16 %v1379
    %v1453 = vunpack.c.l.b16 %v1380
    %v1454 = vunpack.c.l.b16 %v1381
    %v1455 = vunpack.c.h.b16 %v1381
    %v1456 = vunpack.c.l.b16 %v1382
    %v1457 = vunpack.c.l.b16 %v1383
    %v1458 = vunpack.c.h.b16 %v1383
    %v1459 = vunpack.c.l.b16 %v1384
    %v1460 = vunpack.c.l.b16 %v1385
    %v1461 = vunpack.c.h.b16 %v1385
    %v1462 = vunpack.c.l.b16 %v1386
    %v1463 = vunpack.c.l.b16 %v1387
    %v1464 = vunpack.c.h.b16 %v1387
    %v1465 = vunpack.c.l.b16 %v1388
    %v1466 = vunpack.c.l.b16 %v1389
    %v1467 = vunpack.c.h.b16 %v1389
    %v1468 = vunpack.c.l.b16 %v1390
    %v1469 = vunpack.c.l.b16 %v1391
    %v1470 = vunpack.c.h.b16 %v1391
    %v1471 = vunpack.c.l.b16 %v1392
    %v1472 = vunpack.c.l.b16 %v1393
    %v1473 = vunpack.c.h.b16 %v1393
    %v1474 = vunpack.c.l.b16 %v1394
    %v1475 = vpack.c.b16 %v1430, %v1427
    %v1476 = vpack.c.b16 %v1431, %v1428
    %v1477 = vpack.c.b16 %v1432, %v1429
    %v1478 = vpack.c.b16 %v1436, %v1433
    %v1479 = vpack.c.b16 %v1437, %v1434
    %v1480 = vpack.c.b16 %v1438, %v1435
    %v1481 = vpack.c.b16 %v1442, %v1439
    %v1482 = vpack.c.b16 %v1443, %v1440
    %v1483 = vpack.c.b16 %v1444, %v1441
    %v1484 = vpack.c.b16 %v1448, %v1445
    %v1485 = vpack.c.b16 %v1449, %v1446
    %v1486 = vpack.c.b16 %v1450, %v1447
    %v1487 = vpack.c.b16 %v1454, %v1451
    %v1488 = vpack.c.b16 %v1455, %v1452
    %v1489 = vpack.c.b16 %v1456, %v1453
    %v1490 = vpack.c.b16 %v1460, %v1457
    %v1491 = vpack.c.b16 %v1461, %v1458
    %v1492 = vpack.c.b16 %v1462, %v1459
    %v1493 = vpack.c.b16 %v1466, %v1463
    %v1494 = vpack.c.b16 %v1467, %v1464
    %v1495 = vpack.c.b16 %v1468, %v1465
    %v1496 = vpack.c.b16 %v1472, %v1469
    %v1497 = vpack.c.b16 %v1473, %v1470
    %v1498 = vpack.c.b16 %v1474, %v1471
    %1523 = vmatprep.subr.bf16.mxu0 %v1476
    %1524 = vmatpush1.bf16.msra.mxu0 %v1475
    %1525 = vmatprep.subr.bf16.mxu0 %v1479
    %1526 = vmatpush1.bf16.msra.mxu0 %v1478
    %1527 = vmatprep.subr.bf16.mxu0 %v1482
    %1528 = vmatpush1.bf16.msra.mxu0 %v1481
    %1529 = vmatprep.subr.bf16.mxu0 %v1485
    %1530 = vmatpush1.bf16.msra.mxu0 %v1484
    %1531 = vmatprep.subr.bf16.mxu0 %v1488
    %1532 = vmatpush1.bf16.msra.mxu0 %v1487
    %1533 = vmatprep.subr.bf16.mxu0 %v1491
    %1534 = vmatpush1.bf16.msra.mxu0 %v1490
    %1535 = vmatprep.subr.bf16.mxu0 %v1494
    %1536 = vmatpush1.bf16.msra.mxu0 %v1493
    %1537 = vmatprep.subr.bf16.mxu0 %v1497
    %1538 = vmatpush1.bf16.msra.mxu0 %v1496
    %1539 = vmatprep.subr.bf16.mxu0 0
    %1540 = vmatpush1.bf16.msra.mxu0 0
    %1541 = vmatprep.subr.bf16.mxu0 0
    %1542 = vmatpush1.bf16.msra.mxu0 0
    %1543 = vmatprep.subr.bf16.mxu0 0
    %1544 = vmatpush1.bf16.msra.mxu0 0
    %1545 = vmatprep.subr.bf16.mxu0 0
    %1546 = vmatpush1.bf16.msra.mxu0 0
    %1547 = vmatprep.subr.bf16.mxu0 0
    %1548 = vmatpush1.bf16.msra.mxu0 0
    %1549 = vmatprep.subr.bf16.mxu0 0
    %1550 = vmatpush1.bf16.msra.mxu0 0
    %1551 = vmatprep.subr.bf16.mxu0 0
    %1552 = vmatpush1.bf16.msra.mxu0 0
    %1553 = vmatprep.subr.bf16.mxu0 0
    %1554 = vmatpush1.bf16.msra.mxu0 0
    %1555 = vmatprep.mubr.bf16.mxu0 0
    %1556 = vmatmul.mubr.bf16.gmra.mrb[0].mxu0 %v1362
    %v1557 = vpop.f32.mrb[0].mxu0
    %v1558 = vadd.f32 0.0, %v1557
    %v1559 = vpop.f32.mrb[0].mxu0
    %v1560 = vadd.f32 0.0, %v1559
    %v1561 = vpop.f32.mrb[0].mxu0
    %v1562 = vadd.f32 0.0, %v1561
    %v1563 = vpop.f32.mrb[0].mxu0
    %v1564 = vadd.f32 0.0, %v1563
    %1565 = vdwg.mxu0
    %1566 = vmatprep.subr.bf16.mxu0 0
    %1567 = vmatpush1.bf16.msra.mxu0 %v1477
    %1568 = vmatprep.subr.bf16.mxu0 0
    %1569 = vmatpush1.bf16.msra.mxu0 %v1480
    %1570 = vmatprep.subr.bf16.mxu0 0
    %1571 = vmatpush1.bf16.msra.mxu0 %v1483
    %1572 = vmatprep.subr.bf16.mxu0 0
    %1573 = vmatpush1.bf16.msra.mxu0 %v1486
    %1574 = vmatprep.subr.bf16.mxu0 0
    %1575 = vmatpush1.bf16.msra.mxu0 %v1489
    %1576 = vmatprep.subr.bf16.mxu0 0
    %1577 = vmatpush1.bf16.msra.mxu0 %v1492
    %1578 = vmatprep.subr.bf16.mxu0 0
    %1579 = vmatpush1.bf16.msra.mxu0 %v1495
    %1580 = vmatprep.subr.bf16.mxu0 0
    %1581 = vmatpush1.bf16.msra.mxu0 %v1498
    %1582 = vmatprep.subr.bf16.mxu0 0
    %1583 = vmatpush1.bf16.msra.mxu0 0
    %1584 = vmatprep.subr.bf16.mxu0 0
    %1585 = vmatpush1.bf16.msra.mxu0 0
    %1586 = vmatprep.subr.bf16.mxu0 0
    %1587 = vmatpush1.bf16.msra.mxu0 0
    %1588 = vmatprep.subr.bf16.mxu0 0
    %1589 = vmatpush1.bf16.msra.mxu0 0
    %1590 = vmatprep.subr.bf16.mxu0 0
    %1591 = vmatpush1.bf16.msra.mxu0 0
    %1592 = vmatprep.subr.bf16.mxu0 0
    %1593 = vmatpush1.bf16.msra.mxu0 0
    %1594 = vmatprep.subr.bf16.mxu0 0
    %1595 = vmatpush1.bf16.msra.mxu0 0
    %1596 = vmatprep.subr.bf16.mxu0 0
    %1597 = vmatpush1.bf16.msra.mxu0 0
    %1598 = vmatprep.mubr.bf16.mxu0 0
    %1599 = vmatmul.mubr.bf16.gmra.mrb[0].mxu0 %v1362
    %v1600 = vpop.f32.mrb[0].mxu0
    %v1601 = vadd.f32 0.0, %v1600
    %v1602 = vpop.f32.mrb[0].mxu0
    %v1603 = vpop.f32.mrb[0].mxu0
    %v1604 = vadd.f32 0.0, %v1603
    %v1605 = vpop.f32.mrb[0].mxu0
    %1606 = vdwg.mxu0
    %1607 = vst [vmem:[#allocation4 + $0x60] sm:$0xff] %v1558
    %1608 = vst [vmem:[#allocation4 + $0x68] sm:$0xff] %v1560
    %1609 = vst [vmem:[#allocation4 + $0x70] sm:$0xff] %v1601
    %1610 = vst [vmem:[#allocation4 + $0x78] sm:$0xff] %v1562
    %1611 = vst [vmem:[#allocation4 + $0x80] sm:$0xff] %v1564
    %1612 = vst [vmem:[#allocation4 + $0x88] sm:$0xff] %v1604
    %1613 = vst [vmem:[#allocation3 + $0x20] sm:$0xff] %v1356
    %1614 = vst [vmem:[#allocation3 + $0x28] sm:$0xff] %v1360
    %v1615 = vld [vmem:[#allocation4 + $0x60] sm:$0xff]
    %v1616 = vld [vmem:[#allocation4 + $0x68] sm:$0xff]
    %v1617 = vld [vmem:[#allocation4 + $0x70] sm:$0xff]
    %v1618 = vld [vmem:[#allocation4 + $0x78] sm:$0xff]
    %v1619 = vld [vmem:[#allocation4 + $0x80] sm:$0xff]
    %v1620 = vld [vmem:[#allocation4 + $0x88] sm:$0xff]
    %v1621 = vld [vmem:[%s6] sm:$0x7]
    %v1623 = vlaneseq
    %v1624 = vshrl.u32 %v1623, 7
    %v1625 = vsub.s32 0, %v1624
    %v1626 = vrot.slane %v1621, %v1625
    %v1627 = vlaneseq
    %v1628 = vshrl.u32 %v1627, 7
    %v1629 = vsub.s32 1, %v1628
    %v1630 = vrot.slane %v1621, %v1629
    %v1631 = vlaneseq
    %v1632 = vshrl.u32 %v1631, 7
    %v1633 = vsub.s32 2, %v1632
    %v1634 = vrot.slane %v1621, %v1633
    %v1638 = vadd.f32 %v1615, %v1626
    %v1639 = vadd.f32 %v1616, %v1630
    %v1640 = vadd.f32 %v1617, %v1634
    %v1641 = vadd.f32 %v1618, %v1626
    %v1642 = vadd.f32 %v1619, %v1630
    %v1643 = vadd.f32 %v1620, %v1634
    %v1644 = vxor.u32 %v1638, 2147483648
    %v1645 = vxor.u32 %v1641, 2147483648
    %v1646 = vmul.f32 %v1644, 1.442695
    %v1647 = vpow.pop %v1646
    %v1648 = vmul.f32 %v1645, 1.442695
    %v1649 = vpow.pop %v1648
    %v1650 = vadd.f32 %v1647, 1.0
    %v1651 = vadd.f32 %v1649, 1.0
    %v1652 = vrcp.pop %v1650
    %v1653 = vmul.f32 1.0, %v1652
    %v1654 = vrcp.pop %v1651
    %v1655 = vmul.f32 1.0, %v1654
    %v1656 = vxor.u32 %v1639, 2147483648
    %v1657 = vxor.u32 %v1642, 2147483648
    %v1658 = vmul.f32 %v1656, 1.442695
    %v1659 = vpow.pop %v1658
    %v1660 = vmul.f32 %v1657, 1.442695
    %v1661 = vpow.pop %v1660
    %v1662 = vadd.f32 %v1659, 1.0
    %v1663 = vadd.f32 %v1661, 1.0
    %v1664 = vrcp.pop %v1662
    %v1665 = vmul.f32 1.0, %v1664
    %v1666 = vrcp.pop %v1663
    %v1667 = vmul.f32 1.0, %v1666
    %v1668 = vtanh.pop %v1640
    %v1669 = vtanh.pop %v1643
    %v1670 = vmul.f32 %v1653, %v1668
    %v1671 = vmul.f32 %v1655, %v1669
    %v1672 = vld [vmem:[#allocation3 + $0x20] sm:$0xff]
    %v1673 = vld [vmem:[#allocation3 + $0x28] sm:$0xff]
    %v1674 = vadd.f32 %v1670, %v1672
    %v1675 = vadd.f32 %v1671, %v1673
    %1676 = vst [vmem:[#allocation3 + $0x20] sm:$0xff] %v1674
    %1677 = vst [vmem:[#allocation3 + $0x28] sm:$0xff] %v1675
    %v1678 = vtanh.pop %v1674
    %v1679 = vtanh.pop %v1675
    %v1680 = vmul.f32 %v1665, %v1678
    %v1681 = vmul.f32 %v1667, %v1679
    %v1682 = vpack.c.bf16 %v1681, %v1680
    %1683 = vst [vmem:[#allocation2 + $0x20] sm:$0xff] %v1682
    %v1684 = vld [vmem:[#allocation2] sm:$0xff]
    %v1685 = vld [vmem:[#allocation2 + $0x10] sm:$0xff]
    %v1686 = vld [vmem:[#allocation2 + $0x20] sm:$0xff]
    %v1687 = vld [vmem:[#allocation16] sm:$0xf]
    %v1688 = vld [vmem:[#allocation16 + $0x4] sm:$0xf]
    %v1689 = vld [vmem:[#allocation16 + $0x8] sm:$0xf]
    %v1690 = vld [vmem:[#allocation16 + $0xc] sm:$0xf]
    %v1691 = vld [vmem:[#allocation16 + $0x10] sm:$0xf]
    %v1692 = vld [vmem:[#allocation16 + $0x14] sm:$0xf]
    %v1693 = vld [vmem:[#allocation16 + $0x18] sm:$0xf]
    %v1694 = vld [vmem:[#allocation16 + $0x1c] sm:$0xf]
    %v1695 = vld [vmem:[#allocation16 + $0x20] sm:$0xf]
    %v1696 = vld [vmem:[#allocation16 + $0x24] sm:$0xf]
    %v1697 = vld [vmem:[#allocation16 + $0x28] sm:$0xf]
    %v1698 = vld [vmem:[#allocation16 + $0x2c] sm:$0xf]
    %v1699 = vld [vmem:[#allocation16 + $0x30] sm:$0xf]
    %v1700 = vld [vmem:[#allocation16 + $0x34] sm:$0xf]
    %v1701 = vld [vmem:[#allocation16 + $0x38] sm:$0xf]
    %v1702 = vld [vmem:[#allocation16 + $0x3c] sm:$0xf]
    %v1703 = vld [vmem:[%s8] sm:$0x1]
    %v1705 = vlaneseq
    %v1706 = vshrl.u32 %v1705, 7
    %v1707 = vsub.s32 0, %v1706
    %v1708 = vrot.slane %v1703, %v1707
    %v1726 = vunpack.c.l.b16 %v1687
    %v1727 = vunpack.c.l.b16 %v1688
    %v1728 = vunpack.c.l.b16 %v1689
    %v1729 = vunpack.c.l.b16 %v1690
    %v1730 = vunpack.c.l.b16 %v1691
    %v1731 = vunpack.c.l.b16 %v1692
    %v1732 = vunpack.c.l.b16 %v1693
    %v1733 = vunpack.c.l.b16 %v1694
    %v1734 = vunpack.c.l.b16 %v1695
    %v1735 = vunpack.c.l.b16 %v1696
    %v1736 = vunpack.c.l.b16 %v1697
    %v1737 = vunpack.c.l.b16 %v1698
    %v1738 = vunpack.c.l.b16 %v1699
    %v1739 = vunpack.c.l.b16 %v1700
    %v1740 = vunpack.c.l.b16 %v1701
    %v1741 = vunpack.c.l.b16 %v1702
    %v1742 = vpack.c.b16 %v1727, %v1726
    %v1743 = vpack.c.b16 %v1729, %v1728
    %v1744 = vpack.c.b16 %v1731, %v1730
    %v1745 = vpack.c.b16 %v1733, %v1732
    %v1746 = vpack.c.b16 %v1735, %v1734
    %v1747 = vpack.c.b16 %v1737, %v1736
    %v1748 = vpack.c.b16 %v1739, %v1738
    %v1749 = vpack.c.b16 %v1741, %v1740
    %1758 = vmatprep.subr.bf16.mxu0 0
    %1759 = vmatpush1.bf16.msra.mxu0 %v1742
    %1760 = vmatprep.subr.bf16.mxu0 0
    %1761 = vmatpush1.bf16.msra.mxu0 %v1743
    %1762 = vmatprep.subr.bf16.mxu0 0
    %1763 = vmatpush1.bf16.msra.mxu0 %v1744
    %1764 = vmatprep.subr.bf16.mxu0 0
    %1765 = vmatpush1.bf16.msra.mxu0 %v1745
    %1766 = vmatprep.subr.bf16.mxu0 0
    %1767 = vmatpush1.bf16.msra.mxu0 %v1746
    %1768 = vmatprep.subr.bf16.mxu0 0
    %1769 = vmatpush1.bf16.msra.mxu0 %v1747
    %1770 = vmatprep.subr.bf16.mxu0 0
    %1771 = vmatpush1.bf16.msra.mxu0 %v1748
    %1772 = vmatprep.subr.bf16.mxu0 0
    %1773 = vmatpush1.bf16.msra.mxu0 %v1749
    %1774 = vmatprep.subr.bf16.mxu0 0
    %1775 = vmatpush1.bf16.msra.mxu0 0
    %1776 = vmatprep.subr.bf16.mxu0 0
    %1777 = vmatpush1.bf16.msra.mxu0 0
    %1778 = vmatprep.subr.bf16.mxu0 0
    %1779 = vmatpush1.bf16.msra.mxu0 0
    %1780 = vmatprep.subr.bf16.mxu0 0
    %1781 = vmatpush1.bf16.msra.mxu0 0
    %1782 = vmatprep.subr.bf16.mxu0 0
    %1783 = vmatpush1.bf16.msra.mxu0 0
    %1784 = vmatprep.subr.bf16.mxu0 0
    %1785 = vmatpush1.bf16.msra.mxu0 0
    %1786 = vmatprep.subr.bf16.mxu0 0
    %1787 = vmatpush1.bf16.msra.mxu0 0
    %1788 = vmatprep.subr.bf16.mxu0 0
    %1789 = vmatpush1.bf16.msra.mxu0 0
    %1790 = vmatprep.mubr.bf16.mxu0 0
    %1791 = vmatmul.mubr.bf16.gmra.mrb[0].mxu0 %v1684
    %v1792 = vpop.f32.mrb[0].mxu0
    %v1793 = vadd.f32 %v1708, %v1792
    %v1794 = vpop.f32.mrb[0].mxu0
    %v1795 = vpop.f32.mrb[0].mxu0
    %v1796 = vadd.f32 %v1708, %v1795
    %v1797 = vpop.f32.mrb[0].mxu0
    %1798 = vmatprep.mubr.bf16.mxu0 0
    %1799 = vmatmul.mubr.bf16.gmra.mrb[0].mxu0 %v1685
    %v1800 = vpop.f32.mrb[0].mxu0
    %v1801 = vadd.f32 %v1708, %v1800
    %v1802 = vpop.f32.mrb[0].mxu0
    %v1803 = vpop.f32.mrb[0].mxu0
    %v1804 = vadd.f32 %v1708, %v1803
    %v1805 = vpop.f32.mrb[0].mxu0
    %1806 = vmatprep.mubr.bf16.mxu0 0
    %1807 = vmatmul.mubr.bf16.gmra.mrb[0].mxu0 %v1686
    %v1808 = vpop.f32.mrb[0].mxu0
    %v1809 = vadd.f32 %v1708, %v1808
    %v1810 = vpop.f32.mrb[0].mxu0
    %v1811 = vpop.f32.mrb[0].mxu0
    %v1812 = vadd.f32 %v1708, %v1811
    %v1813 = vpop.f32.mrb[0].mxu0
    %1814 = vdwg.mxu0
    %v1815 = vxor.u32 %v1793, 2147483648
    %v1816 = vxor.u32 %v1796, 2147483648
    %v1817 = vxor.u32 %v1801, 2147483648
    %v1818 = vxor.u32 %v1804, 2147483648
    %v1819 = vxor.u32 %v1809, 2147483648
    %v1820 = vxor.u32 %v1812, 2147483648
    %v1821 = vmul.f32 %v1815, 1.442695
    %v1822 = vpow.pop %v1821
    %v1823 = vmul.f32 %v1816, 1.442695
    %v1824 = vpow.pop %v1823
    %v1825 = vmul.f32 %v1817, 1.442695
    %v1826 = vpow.pop %v1825
    %v1827 = vmul.f32 %v1818, 1.442695
    %v1828 = vpow.pop %v1827
    %v1829 = vmul.f32 %v1819, 1.442695
    %v1830 = vpow.pop %v1829
    %v1831 = vmul.f32 %v1820, 1.442695
    %v1832 = vpow.pop %v1831
    %v1833 = vadd.f32 %v1822, 1.0
    %v1834 = vadd.f32 %v1824, 1.0
    %v1835 = vadd.f32 %v1826, 1.0
    %v1836 = vadd.f32 %v1828, 1.0
    %v1837 = vadd.f32 %v1830, 1.0
    %v1838 = vadd.f32 %v1832, 1.0
    %v1839 = vrcp.pop %v1833
    %v1840 = vmul.f32 1.0, %v1839
    %v1841 = vrcp.pop %v1834
    %v1842 = vmul.f32 1.0, %v1841
    %v1843 = vrcp.pop %v1835
    %v1844 = vmul.f32 1.0, %v1843
    %v1845 = vrcp.pop %v1836
    %v1846 = vmul.f32 1.0, %v1845
    %v1847 = vrcp.pop %v1837
    %v1848 = vmul.f32 1.0, %v1847
    %v1849 = vrcp.pop %v1838
    %v1850 = vmul.f32 1.0, %v1849
    %v1851 = vld [vmem:[#allocation3] sm:$0xff]
    %v1852 = vld [vmem:[#allocation3 + $0x8] sm:$0xff]
    %v1853 = vld [vmem:[#allocation3 + $0x10] sm:$0xff]
    %v1854 = vld [vmem:[#allocation3 + $0x18] sm:$0xff]
    %v1855 = vld [vmem:[#allocation3 + $0x20] sm:$0xff]
    %v1856 = vld [vmem:[#allocation3 + $0x28] sm:$0xff]
    %v1857 = vmul.f32 %v1840, %v1851
    %v1858 = vmul.f32 %v1842, %v1852
    %v1859 = vmul.f32 %v1844, %v1853
    %v1860 = vmul.f32 %v1846, %v1854
    %v1861 = vmul.f32 %v1848, %v1855
    %v1862 = vmul.f32 %v1850, %v1856
    %v1863 = vpack.c.bf16 %v1858, %v1857
    %v1864 = vpack.c.bf16 %v1860, %v1859
    %v1865 = vpack.c.bf16 %v1862, %v1861
    %1866 = vst [vmem:[#allocation2 + $0x8] sm:$0xff] %v1863
    %1867 = vst [vmem:[#allocation2 + $0x18] sm:$0xff] %v1864
    %1868 = vst [vmem:[#allocation2 + $0x28] sm:$0xff] %v1865
    %v1869 = vld [vmem:[#allocation8 + $0x18] sm:$0xf]
    %v1870 = vld [vmem:[#allocation8 + $0x1c] sm:$0xf]
    %v1871 = vld [vmem:[#allocation2] sm:$0xff]
    %v1872 = vld [vmem:[#allocation2 + $0x8] sm:$0xff]
    %v1873 = vld [vmem:[#allocation2 + $0x10] sm:$0xff]
    %v1874 = vld [vmem:[#allocation2 + $0x18] sm:$0xff]
    %v1875 = vld [vmem:[#allocation2 + $0x20] sm:$0xff]
    %v1876 = vld [vmem:[#allocation2 + $0x28] sm:$0xff]
    %v1877 = vld [vmem:[#allocation2 + $0x30] sm:$0xff]
    %v1878 = vld [vmem:[#allocation2 + $0x38] sm:$0xff]
    %v1881 = vunpack.c.l.b16 %v1869
    %v1882 = vunpack.c.l.b16 %v1870
    %v1883 = vpack.c.b16 %v1882, %v1881
    %v1885 = vsel %vm774, %v1883, 0
    %1887 = vmatprep.subr.bf16.mxu0 %v1872
    %1888 = vmatpush1.bf16.msra.mxu0 %v1871
    %1889 = vmatprep.subr.bf16.mxu0 %v1874
    %1890 = vmatpush1.bf16.msra.mxu0 %v1873
    %1891 = vmatprep.subr.bf16.mxu0 %v1876
    %1892 = vmatpush1.bf16.msra.mxu0 %v1875
    %1893 = vmatprep.subr.bf16.mxu0 %v1878
    %1894 = vmatpush1.bf16.msra.mxu0 %v1877
    %1895 = vmatprep.subr.bf16.mxu0 0
    %1896 = vmatpush1.bf16.msra.mxu0 0
    %1897 = vmatprep.subr.bf16.mxu0 0
    %1898 = vmatpush1.bf16.msra.mxu0 0
    %1899 = vmatprep.subr.bf16.mxu0 0
    %1900 = vmatpush1.bf16.msra.mxu0 0
    %1901 = vmatprep.subr.bf16.mxu0 0
    %1902 = vmatpush1.bf16.msra.mxu0 0
    %1903 = vmatprep.subr.bf16.mxu0 0
    %1904 = vmatpush1.bf16.msra.mxu0 0
    %1905 = vmatprep.subr.bf16.mxu0 0
    %1906 = vmatpush1.bf16.msra.mxu0 0
    %1907 = vmatprep.subr.bf16.mxu0 0
    %1908 = vmatpush1.bf16.msra.mxu0 0
    %1909 = vmatprep.subr.bf16.mxu0 0
    %1910 = vmatpush1.bf16.msra.mxu0 0
    %1911 = vmatprep.subr.bf16.mxu0 0
    %1912 = vmatpush1.bf16.msra.mxu0 0
    %1913 = vmatprep.subr.bf16.mxu0 0
    %1914 = vmatpush1.bf16.msra.mxu0 0
    %1915 = vmatprep.subr.bf16.mxu0 0
    %1916 = vmatpush1.bf16.msra.mxu0 0
    %1917 = vmatprep.subr.bf16.mxu0 0
    %1918 = vmatpush1.bf16.msra.mxu0 0
    %1919 = vmatprep.mubr.bf16.mxu0 0
    %1920 = vmatmul.mubr.bf16.gmra.mrb[0].mxu0 %v1885
    %v1921 = vpop.f32.mrb[0].mxu0
    %v1922 = vadd.f32 0.0, %v1921
    %v1923 = vpop.f32.mrb[0].mxu0
    %v1924 = vadd.f32 0.0, %v1923
    %v1925 = vpop.f32.mrb[0].mxu0
    %v1926 = vadd.f32 0.0, %v1925
    %v1927 = vpop.f32.mrb[0].mxu0
    %v1928 = vadd.f32 0.0, %v1927
    %1929 = vdwg.mxu0
    %v1930 = vpack.c.bf16 %v1926, %v1922
    %v1931 = vld [vmem:[#allocation14] sm:$0xff]
    %v1932 = vld [vmem:[#allocation14 + $0x8] sm:$0xf]
    %v1933 = vld [vmem:[#allocation14 + $0xc] sm:$0xff]
    %v1934 = vld [vmem:[#allocation14 + $0x14] sm:$0xf]
    %v1935 = vld [vmem:[#allocation14 + $0x18] sm:$0xff]
    %v1936 = vld [vmem:[#allocation14 + $0x20] sm:$0xf]
    %v1937 = vld [vmem:[#allocation14 + $0x24] sm:$0xff]
    %v1938 = vld [vmem:[#allocation14 + $0x2c] sm:$0xf]
    %v1939 = vld [vmem:[#allocation14 + $0x30] sm:$0xff]
    %v1940 = vld [vmem:[#allocation14 + $0x38] sm:$0xf]
    %v1941 = vld [vmem:[#allocation14 + $0x3c] sm:$0xff]
    %v1942 = vld [vmem:[#allocation14 + $0x44] sm:$0xf]
    %v1943 = vld [vmem:[#allocation14 + $0x48] sm:$0xff]
    %v1944 = vld [vmem:[#allocation14 + $0x50] sm:$0xf]
    %v1945 = vld [vmem:[#allocation14 + $0x54] sm:$0xff]
    %v1946 = vld [vmem:[#allocation14 + $0x5c] sm:$0xf]
    %v1947 = vld [vmem:[#allocation14 + $0x60] sm:$0xff]
    %v1948 = vld [vmem:[#allocation14 + $0x68] sm:$0xf]
    %v1949 = vld [vmem:[#allocation14 + $0x6c] sm:$0xff]
    %v1950 = vld [vmem:[#allocation14 + $0x74] sm:$0xf]
    %v1951 = vld [vmem:[#allocation14 + $0x78] sm:$0xff]
    %v1952 = vld [vmem:[#allocation14 + $0x80] sm:$0xf]
    %v1953 = vld [vmem:[#allocation14 + $0x84] sm:$0xff]
    %v1954 = vld [vmem:[#allocation14 + $0x8c] sm:$0xf]
    %v1955 = vld [vmem:[#allocation14 + $0x90] sm:$0xff]
    %v1956 = vld [vmem:[#allocation14 + $0x98] sm:$0xf]
    %v1957 = vld [vmem:[#allocation14 + $0x9c] sm:$0xff]
    %v1958 = vld [vmem:[#allocation14 + $0xa4] sm:$0xf]
    %v1959 = vld [vmem:[#allocation14 + $0xa8] sm:$0xff]
    %v1960 = vld [vmem:[#allocation14 + $0xb0] sm:$0xf]
    %v1961 = vld [vmem:[#allocation14 + $0xb4] sm:$0xff]
    %v1962 = vld [vmem:[#allocation14 + $0xbc] sm:$0xf]
    %v1995 = vunpack.c.l.b16 %v1931
    %v1996 = vunpack.c.h.b16 %v1931
    %v1997 = vunpack.c.l.b16 %v1932
    %v1998 = vunpack.c.l.b16 %v1933
    %v1999 = vunpack.c.h.b16 %v1933
    %v2000 = vunpack.c.l.b16 %v1934
    %v2001 = vunpack.c.l.b16 %v1935
    %v2002 = vunpack.c.h.b16 %v1935
    %v2003 = vunpack.c.l.b16 %v1936
    %v2004 = vunpack.c.l.b16 %v1937
    %v2005 = vunpack.c.h.b16 %v1937
    %v2006 = vunpack.c.l.b16 %v1938
    %v2007 = vunpack.c.l.b16 %v1939
    %v2008 = vunpack.c.h.b16 %v1939
    %v2009 = vunpack.c.l.b16 %v1940
    %v2010 = vunpack.c.l.b16 %v1941
    %v2011 = vunpack.c.h.b16 %v1941
    %v2012 = vunpack.c.l.b16 %v1942
    %v2013 = vunpack.c.l.b16 %v1943
    %v2014 = vunpack.c.h.b16 %v1943
    %v2015 = vunpack.c.l.b16 %v1944
    %v2016 = vunpack.c.l.b16 %v1945
    %v2017 = vunpack.c.h.b16 %v1945
    %v2018 = vunpack.c.l.b16 %v1946
    %v2019 = vunpack.c.l.b16 %v1947
    %v2020 = vunpack.c.h.b16 %v1947
    %v2021 = vunpack.c.l.b16 %v1948
    %v2022 = vunpack.c.l.b16 %v1949
    %v2023 = vunpack.c.h.b16 %v1949
    %v2024 = vunpack.c.l.b16 %v1950
    %v2025 = vunpack.c.l.b16 %v1951
    %v2026 = vunpack.c.h.b16 %v1951
    %v2027 = vunpack.c.l.b16 %v1952
    %v2028 = vunpack.c.l.b16 %v1953
    %v2029 = vunpack.c.h.b16 %v1953
    %v2030 = vunpack.c.l.b16 %v1954
    %v2031 = vunpack.c.l.b16 %v1955
    %v2032 = vunpack.c.h.b16 %v1955
    %v2033 = vunpack.c.l.b16 %v1956
    %v2034 = vunpack.c.l.b16 %v1957
    %v2035 = vunpack.c.h.b16 %v1957
    %v2036 = vunpack.c.l.b16 %v1958
    %v2037 = vunpack.c.l.b16 %v1959
    %v2038 = vunpack.c.h.b16 %v1959
    %v2039 = vunpack.c.l.b16 %v1960
    %v2040 = vunpack.c.l.b16 %v1961
    %v2041 = vunpack.c.h.b16 %v1961
    %v2042 = vunpack.c.l.b16 %v1962
    %v2043 = vpack.c.b16 %v1998, %v1995
    %v2044 = vpack.c.b16 %v1999, %v1996
    %v2045 = vpack.c.b16 %v2000, %v1997
    %v2046 = vpack.c.b16 %v2004, %v2001
    %v2047 = vpack.c.b16 %v2005, %v2002
    %v2048 = vpack.c.b16 %v2006, %v2003
    %v2049 = vpack.c.b16 %v2010, %v2007
    %v2050 = vpack.c.b16 %v2011, %v2008
    %v2051 = vpack.c.b16 %v2012, %v2009
    %v2052 = vpack.c.b16 %v2016, %v2013
    %v2053 = vpack.c.b16 %v2017, %v2014
    %v2054 = vpack.c.b16 %v2018, %v2015
    %v2055 = vpack.c.b16 %v2022, %v2019
    %v2056 = vpack.c.b16 %v2023, %v2020
    %v2057 = vpack.c.b16 %v2024, %v2021
    %v2058 = vpack.c.b16 %v2028, %v2025
    %v2059 = vpack.c.b16 %v2029, %v2026
    %v2060 = vpack.c.b16 %v2030, %v2027
    %v2061 = vpack.c.b16 %v2034, %v2031
    %v2062 = vpack.c.b16 %v2035, %v2032
    %v2063 = vpack.c.b16 %v2036, %v2033
    %v2064 = vpack.c.b16 %v2040, %v2037
    %v2065 = vpack.c.b16 %v2041, %v2038
    %v2066 = vpack.c.b16 %v2042, %v2039
    %2091 = vmatprep.subr.bf16.mxu0 %v2044
    %2092 = vmatpush1.bf16.msra.mxu0 %v2043
    %2093 = vmatprep.subr.bf16.mxu0 %v2047
    %2094 = vmatpush1.bf16.msra.mxu0 %v2046
    %2095 = vmatprep.subr.bf16.mxu0 %v2050
    %2096 = vmatpush1.bf16.msra.mxu0 %v2049
    %2097 = vmatprep.subr.bf16.mxu0 %v2053
    %2098 = vmatpush1.bf16.msra.mxu0 %v2052
    %2099 = vmatprep.subr.bf16.mxu0 %v2056
    %2100 = vmatpush1.bf16.msra.mxu0 %v2055
    %2101 = vmatprep.subr.bf16.mxu0 %v2059
    %2102 = vmatpush1.bf16.msra.mxu0 %v2058
    %2103 = vmatprep.subr.bf16.mxu0 %v2062
    %2104 = vmatpush1.bf16.msra.mxu0 %v2061
    %2105 = vmatprep.subr.bf16.mxu0 %v2065
    %2106 = vmatpush1.bf16.msra.mxu0 %v2064
    %2107 = vmatprep.subr.bf16.mxu0 0
    %2108 = vmatpush1.bf16.msra.mxu0 0
    %2109 = vmatprep.subr.bf16.mxu0 0
    %2110 = vmatpush1.bf16.msra.mxu0 0
    %2111 = vmatprep.subr.bf16.mxu0 0
    %2112 = vmatpush1.bf16.msra.mxu0 0
    %2113 = vmatprep.subr.bf16.mxu0 0
    %2114 = vmatpush1.bf16.msra.mxu0 0
    %2115 = vmatprep.subr.bf16.mxu0 0
    %2116 = vmatpush1.bf16.msra.mxu0 0
    %2117 = vmatprep.subr.bf16.mxu0 0
    %2118 = vmatpush1.bf16.msra.mxu0 0
    %2119 = vmatprep.subr.bf16.mxu0 0
    %2120 = vmatpush1.bf16.msra.mxu0 0
    %2121 = vmatprep.subr.bf16.mxu0 0
    %2122 = vmatpush1.bf16.msra.mxu0 0
    %2123 = vmatprep.mubr.bf16.mxu0 0
    %2124 = vmatmul.mubr.bf16.gmra.mrb[0].mxu0 %v1930
    %v2125 = vpop.f32.mrb[0].mxu0
    %v2126 = vadd.f32 0.0, %v2125
    %v2127 = vpop.f32.mrb[0].mxu0
    %v2128 = vadd.f32 0.0, %v2127
    %v2129 = vpop.f32.mrb[0].mxu0
    %v2130 = vadd.f32 0.0, %v2129
    %v2131 = vpop.f32.mrb[0].mxu0
    %v2132 = vadd.f32 0.0, %v2131
    %2133 = vdwg.mxu0
    %2134 = vmatprep.subr.bf16.mxu0 0
    %2135 = vmatpush1.bf16.msra.mxu0 %v2045
    %2136 = vmatprep.subr.bf16.mxu0 0
    %2137 = vmatpush1.bf16.msra.mxu0 %v2048
    %2138 = vmatprep.subr.bf16.mxu0 0
    %2139 = vmatpush1.bf16.msra.mxu0 %v2051
    %2140 = vmatprep.subr.bf16.mxu0 0
    %2141 = vmatpush1.bf16.msra.mxu0 %v2054
    %2142 = vmatprep.subr.bf16.mxu0 0
    %2143 = vmatpush1.bf16.msra.mxu0 %v2057
    %2144 = vmatprep.subr.bf16.mxu0 0
    %2145 = vmatpush1.bf16.msra.mxu0 %v2060
    %2146 = vmatprep.subr.bf16.mxu0 0
    %2147 = vmatpush1.bf16.msra.mxu0 %v2063
    %2148 = vmatprep.subr.bf16.mxu0 0
    %2149 = vmatpush1.bf16.msra.mxu0 %v2066
    %2150 = vmatprep.subr.bf16.mxu0 0
    %2151 = vmatpush1.bf16.msra.mxu0 0
    %2152 = vmatprep.subr.bf16.mxu0 0
    %2153 = vmatpush1.bf16.msra.mxu0 0
    %2154 = vmatprep.subr.bf16.mxu0 0
    %2155 = vmatpush1.bf16.msra.mxu0 0
    %2156 = vmatprep.subr.bf16.mxu0 0
    %2157 = vmatpush1.bf16.msra.mxu0 0
    %2158 = vmatprep.subr.bf16.mxu0 0
    %2159 = vmatpush1.bf16.msra.mxu0 0
    %2160 = vmatprep.subr.bf16.mxu0 0
    %2161 = vmatpush1.bf16.msra.mxu0 0
    %2162 = vmatprep.subr.bf16.mxu0 0
    %2163 = vmatpush1.bf16.msra.mxu0 0
    %2164 = vmatprep.subr.bf16.mxu0 0
    %2165 = vmatpush1.bf16.msra.mxu0 0
    %2166 = vmatprep.mubr.bf16.mxu0 0
    %2167 = vmatmul.mubr.bf16.gmra.mrb[0].mxu0 %v1930
    %v2168 = vpop.f32.mrb[0].mxu0
    %v2169 = vadd.f32 0.0, %v2168
    %v2170 = vpop.f32.mrb[0].mxu0
    %v2171 = vpop.f32.mrb[0].mxu0
    %v2172 = vadd.f32 0.0, %v2171
    %v2173 = vpop.f32.mrb[0].mxu0
    %2174 = vdwg.mxu0
    %2175 = vst [vmem:[#allocation4 + $0x90] sm:$0xff] %v2126
    %2176 = vst [vmem:[#allocation4 + $0x98] sm:$0xff] %v2128
    %2177 = vst [vmem:[#allocation4 + $0xa0] sm:$0xff] %v2169
    %2178 = vst [vmem:[#allocation4 + $0xa8] sm:$0xff] %v2130
    %2179 = vst [vmem:[#allocation4 + $0xb0] sm:$0xff] %v2132
    %2180 = vst [vmem:[#allocation4 + $0xb8] sm:$0xff] %v2172
    %2181 = vst [vmem:[#allocation3 + $0x30] sm:$0xff] %v1924
    %2182 = vst [vmem:[#allocation3 + $0x38] sm:$0xff] %v1928
    %v2183 = vld [vmem:[#allocation4 + $0x90] sm:$0xff]
    %v2184 = vld [vmem:[#allocation4 + $0x98] sm:$0xff]
    %v2185 = vld [vmem:[#allocation4 + $0xa0] sm:$0xff]
    %v2186 = vld [vmem:[#allocation4 + $0xa8] sm:$0xff]
    %v2187 = vld [vmem:[#allocation4 + $0xb0] sm:$0xff]
    %v2188 = vld [vmem:[#allocation4 + $0xb8] sm:$0xff]
    %v2189 = vld [vmem:[%s6] sm:$0x7]
    %v2191 = vlaneseq
    %v2192 = vshrl.u32 %v2191, 7
    %v2193 = vsub.s32 0, %v2192
    %v2194 = vrot.slane %v2189, %v2193
    %v2195 = vlaneseq
    %v2196 = vshrl.u32 %v2195, 7
    %v2197 = vsub.s32 1, %v2196
    %v2198 = vrot.slane %v2189, %v2197
    %v2199 = vlaneseq
    %v2200 = vshrl.u32 %v2199, 7
    %v2201 = vsub.s32 2, %v2200
    %v2202 = vrot.slane %v2189, %v2201
    %v2206 = vadd.f32 %v2183, %v2194
    %v2207 = vadd.f32 %v2184, %v2198
    %v2208 = vadd.f32 %v2185, %v2202
    %v2209 = vadd.f32 %v2186, %v2194
    %v2210 = vadd.f32 %v2187, %v2198
    %v2211 = vadd.f32 %v2188, %v2202
    %v2212 = vxor.u32 %v2206, 2147483648
    %v2213 = vxor.u32 %v2209, 2147483648
    %v2214 = vmul.f32 %v2212, 1.442695
    %v2215 = vpow.pop %v2214
    %v2216 = vmul.f32 %v2213, 1.442695
    %v2217 = vpow.pop %v2216
    %v2218 = vadd.f32 %v2215, 1.0
    %v2219 = vadd.f32 %v2217, 1.0
    %v2220 = vrcp.pop %v2218
    %v2221 = vmul.f32 1.0, %v2220
    %v2222 = vrcp.pop %v2219
    %v2223 = vmul.f32 1.0, %v2222
    %v2224 = vxor.u32 %v2207, 2147483648
    %v2225 = vxor.u32 %v2210, 2147483648
    %v2226 = vmul.f32 %v2224, 1.442695
    %v2227 = vpow.pop %v2226
    %v2228 = vmul.f32 %v2225, 1.442695
    %v2229 = vpow.pop %v2228
    %v2230 = vadd.f32 %v2227, 1.0
    %v2231 = vadd.f32 %v2229, 1.0
    %v2232 = vrcp.pop %v2230
    %v2233 = vmul.f32 1.0, %v2232
    %v2234 = vrcp.pop %v2231
    %v2235 = vmul.f32 1.0, %v2234
    %v2236 = vtanh.pop %v2208
    %v2237 = vtanh.pop %v2211
    %v2238 = vmul.f32 %v2221, %v2236
    %v2239 = vmul.f32 %v2223, %v2237
    %v2240 = vld [vmem:[#allocation3 + $0x30] sm:$0xff]
    %v2241 = vld [vmem:[#allocation3 + $0x38] sm:$0xff]
    %v2242 = vadd.f32 %v2238, %v2240
    %v2243 = vadd.f32 %v2239, %v2241
    %2244 = vst [vmem:[#allocation3 + $0x30] sm:$0xff] %v2242
    %2245 = vst [vmem:[#allocation3 + $0x38] sm:$0xff] %v2243
    %v2246 = vtanh.pop %v2242
    %v2247 = vtanh.pop %v2243
    %v2248 = vmul.f32 %v2233, %v2246
    %v2249 = vmul.f32 %v2235, %v2247
    %v2250 = vpack.c.bf16 %v2249, %v2248
    %2251 = vst [vmem:[#allocation2 + $0x30] sm:$0xff] %v2250
    %v2252 = vld [vmem:[#allocation2] sm:$0xff]
    %v2253 = vld [vmem:[#allocation2 + $0x10] sm:$0xff]
    %v2254 = vld [vmem:[#allocation2 + $0x20] sm:$0xff]
    %v2255 = vld [vmem:[#allocation2 + $0x30] sm:$0xff]
    %v2256 = vld [vmem:[#allocation17] sm:$0xf]
    %v2257 = vld [vmem:[#allocation17 + $0x4] sm:$0xf]
    %v2258 = vld [vmem:[#allocation17 + $0x8] sm:$0xf]
    %v2259 = vld [vmem:[#allocation17 + $0xc] sm:$0xf]
    %v2260 = vld [vmem:[#allocation17 + $0x10] sm:$0xf]
    %v2261 = vld [vmem:[#allocation17 + $0x14] sm:$0xf]
    %v2262 = vld [vmem:[#allocation17 + $0x18] sm:$0xf]
    %v2263 = vld [vmem:[#allocation17 + $0x1c] sm:$0xf]
    %v2264 = vld [vmem:[#allocation17 + $0x20] sm:$0xf]
    %v2265 = vld [vmem:[#allocation17 + $0x24] sm:$0xf]
    %v2266 = vld [vmem:[#allocation17 + $0x28] sm:$0xf]
    %v2267 = vld [vmem:[#allocation17 + $0x2c] sm:$0xf]
    %v2268 = vld [vmem:[#allocation17 + $0x30] sm:$0xf]
    %v2269 = vld [vmem:[#allocation17 + $0x34] sm:$0xf]
    %v2270 = vld [vmem:[#allocation17 + $0x38] sm:$0xf]
    %v2271 = vld [vmem:[#allocation17 + $0x3c] sm:$0xf]
    %v2272 = vld [vmem:[%s10] sm:$0x1]
    %v2274 = vlaneseq
    %v2275 = vshrl.u32 %v2274, 7
    %v2276 = vsub.s32 0, %v2275
    %v2277 = vrot.slane %v2272, %v2276
    %v2295 = vunpack.c.l.b16 %v2256
    %v2296 = vunpack.c.l.b16 %v2257
    %v2297 = vunpack.c.l.b16 %v2258
    %v2298 = vunpack.c.l.b16 %v2259
    %v2299 = vunpack.c.l.b16 %v2260
    %v2300 = vunpack.c.l.b16 %v2261
    %v2301 = vunpack.c.l.b16 %v2262
    %v2302 = vunpack.c.l.b16 %v2263
    %v2303 = vunpack.c.l.b16 %v2264
    %v2304 = vunpack.c.l.b16 %v2265
    %v2305 = vunpack.c.l.b16 %v2266
    %v2306 = vunpack.c.l.b16 %v2267
    %v2307 = vunpack.c.l.b16 %v2268
    %v2308 = vunpack.c.l.b16 %v2269
    %v2309 = vunpack.c.l.b16 %v2270
    %v2310 = vunpack.c.l.b16 %v2271
    %v2311 = vpack.c.b16 %v2296, %v2295
    %v2312 = vpack.c.b16 %v2298, %v2297
    %v2313 = vpack.c.b16 %v2300, %v2299
    %v2314 = vpack.c.b16 %v2302, %v2301
    %v2315 = vpack.c.b16 %v2304, %v2303
    %v2316 = vpack.c.b16 %v2306, %v2305
    %v2317 = vpack.c.b16 %v2308, %v2307
    %v2318 = vpack.c.b16 %v2310, %v2309
    %2327 = vmatprep.subr.bf16.mxu0 0
    %2328 = vmatpush1.bf16.msra.mxu0 %v2311
    %2329 = vmatprep.subr.bf16.mxu0 0
    %2330 = vmatpush1.bf16.msra.mxu0 %v2312
    %2331 = vmatprep.subr.bf16.mxu0 0
    %2332 = vmatpush1.bf16.msra.mxu0 %v2313
    %2333 = vmatprep.subr.bf16.mxu0 0
    %2334 = vmatpush1.bf16.msra.mxu0 %v2314
    %2335 = vmatprep.subr.bf16.mxu0 0
    %2336 = vmatpush1.bf16.msra.mxu0 %v2315
    %2337 = vmatprep.subr.bf16.mxu0 0
    %2338 = vmatpush1.bf16.msra.mxu0 %v2316
    %2339 = vmatprep.subr.bf16.mxu0 0
    %2340 = vmatpush1.bf16.msra.mxu0 %v2317
    %2341 = vmatprep.subr.bf16.mxu0 0
    %2342 = vmatpush1.bf16.msra.mxu0 %v2318
    %2343 = vmatprep.subr.bf16.mxu0 0
    %2344 = vmatpush1.bf16.msra.mxu0 0
    %2345 = vmatprep.subr.bf16.mxu0 0
    %2346 = vmatpush1.bf16.msra.mxu0 0
    %2347 = vmatprep.subr.bf16.mxu0 0
    %2348 = vmatpush1.bf16.msra.mxu0 0
    %2349 = vmatprep.subr.bf16.mxu0 0
    %2350 = vmatpush1.bf16.msra.mxu0 0
    %2351 = vmatprep.subr.bf16.mxu0 0
    %2352 = vmatpush1.bf16.msra.mxu0 0
    %2353 = vmatprep.subr.bf16.mxu0 0
    %2354 = vmatpush1.bf16.msra.mxu0 0
    %2355 = vmatprep.subr.bf16.mxu0 0
    %2356 = vmatpush1.bf16.msra.mxu0 0
    %2357 = vmatprep.subr.bf16.mxu0 0
    %2358 = vmatpush1.bf16.msra.mxu0 0
    %2359 = vmatprep.mubr.bf16.mxu0 0
    %2360 = vmatmul.mubr.bf16.gmra.mrb[0].mxu0 %v2252
    %v2361 = vpop.f32.mrb[0].mxu0
    %v2362 = vadd.f32 %v2277, %v2361
    %v2363 = vpop.f32.mrb[0].mxu0
    %v2364 = vpop.f32.mrb[0].mxu0
    %v2365 = vadd.f32 %v2277, %v2364
    %v2366 = vpop.f32.mrb[0].mxu0
    %2367 = vmatprep.mubr.bf16.mxu0 0
    %2368 = vmatmul.mubr.bf16.gmra.mrb[0].mxu0 %v2253
    %v2369 = vpop.f32.mrb[0].mxu0
    %v2370 = vadd.f32 %v2277, %v2369
    %v2371 = vpop.f32.mrb[0].mxu0
    %v2372 = vpop.f32.mrb[0].mxu0
    %v2373 = vadd.f32 %v2277, %v2372
    %v2374 = vpop.f32.mrb[0].mxu0
    %2375 = vmatprep.mubr.bf16.mxu0 0
    %2376 = vmatmul.mubr.bf16.gmra.mrb[0].mxu0 %v2254
    %v2377 = vpop.f32.mrb[0].mxu0
    %v2378 = vadd.f32 %v2277, %v2377
    %v2379 = vpop.f32.mrb[0].mxu0
    %v2380 = vpop.f32.mrb[0].mxu0
    %v2381 = vadd.f32 %v2277, %v2380
    %v2382 = vpop.f32.mrb[0].mxu0
    %2383 = vmatprep.mubr.bf16.mxu0 0
    %2384 = vmatmul.mubr.bf16.gmra.mrb[0].mxu0 %v2255
    %v2385 = vpop.f32.mrb[0].mxu0
    %v2386 = vadd.f32 %v2277, %v2385
    %v2387 = vpop.f32.mrb[0].mxu0
    %v2388 = vpop.f32.mrb[0].mxu0
    %v2389 = vadd.f32 %v2277, %v2388
    %v2390 = vpop.f32.mrb[0].mxu0
    %2391 = vdwg.mxu0
    %2392 = vst [vmem:[#allocation19] sm:$0xff] %v2362
    %2393 = vst [vmem:[#allocation19 + $0x8] sm:$0xff] %v2365
    %2394 = vst [vmem:[#allocation19 + $0x10] sm:$0xff] %v2370
    %2395 = vst [vmem:[#allocation19 + $0x18] sm:$0xff] %v2373
    %2396 = vst [vmem:[#allocation19 + $0x20] sm:$0xff] %v2378
    %2397 = vst [vmem:[#allocation19 + $0x28] sm:$0xff] %v2381
    %2398 = vst [vmem:[#allocation19 + $0x30] sm:$0xff] %v2386
    %2399 = vst [vmem:[#allocation19 + $0x38] sm:$0xff] %v2389
    // Predicated region
    $region78: #{tpu_custom_call.1} parent=1 // pred_check
      _
    $region79: #{tpu_custom_call.1} parent=1 // pred_check_branch
      %2401 = sbr.rel (0) target = $region81
    $region80: #{tpu_custom_call.1} parent=1 // pred_region
      %s2403 = ssub.s32 1024, 1024
      %2404 = vsyncadd [#allocation7], %s2403
      %s2405 = sshll.u32 [#allocation19], 4
      %s2406 = int_to_ptr.vmem [resolvable:$true] %s2405
      %2411 = dma.vmem_to_hbm [thread:$0]  %s2406, 1024, %s11, [#allocation7], 128, 128, 8
    $region81: #{tpu_custom_call.1} parent=1 // pred_fallthru
      _
    // Predicated region
    $region82: #{tpu_custom_call.1} parent=1 // pred_check
      _
    $region83: #{tpu_custom_call.1} parent=1 // pred_check_branch
      %2413 = sbr.rel (0) target = $region85
    $region84: #{tpu_custom_call.1} parent=1 // pred_region
      %2414 = dma.done [#allocation7], 1024
    $region85: #{tpu_custom_call.1} parent=1 // pred_fallthru
      _
    %2415 = vsyncpa [#allocation6], 1
    %2416 = vsyncpa [#allocation9], 1
    %2417 = vsyncpa [#allocation12], 1
    %2418 = vsyncpa [#allocation15], 1
    %2419 = vsyncpa [#allocation18], 1
    %2420 = vsyncpa [#allocation7], 1

</llo_original>
